<compile_context>
chip_gen: v7x
topology: tpu7x:2x2x1
jax: 0.10.0
libtpu: 0.0.40
codegen_flags: <defaults>
</compile_context>

<pallas_src>
import functools

import jax
import jax.numpy as jnp
import numpy as np
from jax.experimental import pallas as pl
from jax.experimental.pallas import tpu as pltpu

_EPS = 1e-5
_LANE = 128


def _round_up(x, m):
    return (x + m - 1) // m * m


def _mosaic_params():
    return pltpu.CompilerParams(
        dimension_semantics=("parallel",),
        vmem_limit_bytes=64 * 1024 * 1024,
    )


# ----------------------------- Pallas kernels ------------------------------ #

def _mm_stats_kernel(p_ref, w_ref, y_ref, ys_ref, yq_ref):
    # conv tile as bf16 MXU matmul with f32 accumulation.
    y = jnp.dot(p_ref[...], w_ref[...], preferred_element_type=jnp.float32)
    y_ref[...] = y
    # Per-tile, per-channel partial sums for the global BatchNorm statistics.
    ys_ref[...] = jnp.sum(y, axis=0, keepdims=True)[None]
    yq_ref[...] = jnp.sum(y * y, axis=0, keepdims=True)[None]


def _mm2_stats_kernel(p_ref, w_ref, q_ref, v_ref,
                      y_ref, z_ref, ys_ref, yq_ref, zs_ref, zq_ref):
    # conv2 matmul and the 1x1 shortcut matmul fused into one pass over M.
    y = jnp.dot(p_ref[...], w_ref[...], preferred_element_type=jnp.float32)
    z = jnp.dot(q_ref[...], v_ref[...], preferred_element_type=jnp.float32)
    y_ref[...] = y
    z_ref[...] = z
    ys_ref[...] = jnp.sum(y, axis=0, keepdims=True)[None]
    yq_ref[...] = jnp.sum(y * y, axis=0, keepdims=True)[None]
    zs_ref[...] = jnp.sum(z, axis=0, keepdims=True)[None]
    zq_ref[...] = jnp.sum(z * z, axis=0, keepdims=True)[None]


def _bn_act_kernel(y_ref, sc_ref, sh_ref, o_ref, *, relu):
    # Pre-fused BN: single FMA per element.
    out = y_ref[...] * sc_ref[...] + sh_ref[...]
    if relu:
        out = jnp.maximum(out, 0.0)
    o_ref[...] = out.astype(o_ref.dtype)


def _bn_dual_add_relu_kernel(y_ref, sc_ref, sh_ref, z_ref, zsc_ref, zsh_ref, o_ref):
    # bn2(conv2) + bn_sc(shortcut conv) + add + ReLU, all in one tile pass.
    out = y_ref[...] * sc_ref[...] + sh_ref[...]
    out = out + (z_ref[...] * zsc_ref[...] + zsh_ref[...])
    o_ref[...] = jnp.maximum(out, 0.0).astype(o_ref.dtype)


def _bn_res_relu_kernel(y_ref, sc_ref, sh_ref, r_ref, o_ref):
    # bn2(conv2) + identity residual + ReLU.
    out = y_ref[...] * sc_ref[...] + sh_ref[...] + r_ref[...].astype(jnp.float32)
    o_ref[...] = jnp.maximum(out, 0.0).astype(o_ref.dtype)


# ---------------------------- pallas_call wrappers -------------------------- #

def _row_spec(tm, cols):
    return pl.BlockSpec((tm, cols), lambda i: (i, 0))


def _full_spec(shape):
    return pl.BlockSpec(shape, lambda i: (0,) * len(shape))


def _stat_spec(c_pad):
    return pl.BlockSpec((1, 1, c_pad), lambda i: (i, 0, 0))


def _matmul_stats(p, w, tm):
    """Phase 1 (single conv): Y = P @ W, plus per-tile (sum, sumsq) per channel."""
    m_pad, k_pad = p.shape
    c_pad = w.shape[1]
    nt = m_pad // tm
    cost = pl.CostEstimate(
        flops=int(2 * m_pad * k_pad * c_pad),
        transcendentals=0,
        bytes_accessed=int(p.size * p.dtype.itemsize + w.size * w.dtype.itemsize
                           + m_pad * c_pad * 4 + 2 * nt * c_pad * 4),
    )
    return pl.pallas_call(
        _mm_stats_kernel,
        grid=(nt,),
        in_specs=[_row_spec(tm, k_pad), _full_spec((k_pad, c_pad))],
        out_specs=[_row_spec(tm, c_pad), _stat_spec(c_pad), _stat_spec(c_pad)],
        out_shape=[jax.ShapeDtypeStruct((m_pad, c_pad), jnp.float32),
                   jax.ShapeDtypeStruct((nt, 1, c_pad), jnp.float32),
                   jax.ShapeDtypeStruct((nt, 1, c_pad), jnp.float32)],
        compiler_params=_mosaic_params(),
        cost_estimate=cost,
    )(p, w)


def _matmul_stats_dual(p, w, q, v, tm):
    """Phase 1 (conv2 + fused 1x1 shortcut conv) in a single pass over M."""
    m_pad, k_pad = p.shape
    c_pad = w.shape[1]
    kq_pad = q.shape[1]
    nt = m_pad // tm
    cost = pl.CostEstimate(
        flops=int(2 * m_pad * c_pad * (k_pad + kq_pad)),
        transcendentals=0,
        bytes_accessed=int(p.size * p.dtype.itemsize + w.size * w.dtype.itemsize
                           + q.size * q.dtype.itemsize + v.size * v.dtype.itemsize
                           + 2 * m_pad * c_pad * 4 + 4 * nt * c_pad * 4),
    )
    return pl.pallas_call(
        _mm2_stats_kernel,
        grid=(nt,),
        in_specs=[_row_spec(tm, k_pad), _full_spec((k_pad, c_pad)),
                  _row_spec(tm, kq_pad), _full_spec((kq_pad, c_pad))],
        out_specs=[_row_spec(tm, c_pad), _row_spec(tm, c_pad),
                   _stat_spec(c_pad), _stat_spec(c_pad),
                   _stat_spec(c_pad), _stat_spec(c_pad)],
        out_shape=[jax.ShapeDtypeStruct((m_pad, c_pad), jnp.float32),
                   jax.ShapeDtypeStruct((m_pad, c_pad), jnp.float32),
                   jax.ShapeDtypeStruct((nt, 1, c_pad), jnp.float32),
                   jax.ShapeDtypeStruct((nt, 1, c_pad), jnp.float32),
                   jax.ShapeDtypeStruct((nt, 1, c_pad), jnp.float32),
                   jax.ShapeDtypeStruct((nt, 1, c_pad), jnp.float32)],
        compiler_params=_mosaic_params(),
        cost_estimate=cost,
    )(p, w, q, v)


def _bn_apply(y, scale, shift, tm, *, relu, out_dtype=jnp.float32,
              dual=None, residual=None):
    """Phase 2: tiled elementwise normalize [+ residual] [+ ReLU]."""
    m_pad, c_pad = y.shape
    nt = m_pad // tm
    vec = _full_spec((1, c_pad))
    if dual is not None:
        z, zscale, zshift = dual
        kernel = _bn_dual_add_relu_kernel
        args = (y, scale, shift, z, zscale, zshift)
        in_specs = [_row_spec(tm, c_pad), vec, vec, _row_spec(tm, c_pad), vec, vec]
    elif residual is not None:
        kernel = _bn_res_relu_kernel
        args = (y, scale, shift, residual)
        in_specs = [_row_spec(tm, c_pad), vec, vec, _row_spec(tm, c_pad)]
    else:
        kernel = functools.partial(_bn_act_kernel, relu=relu)
        args = (y, scale, shift)
        in_specs = [_row_spec(tm, c_pad), vec, vec]
    return pl.pallas_call(
        kernel,
        grid=(nt,),
        in_specs=in_specs,
        out_specs=_row_spec(tm, c_pad),
        out_shape=jax.ShapeDtypeStruct((m_pad, c_pad), out_dtype),
        compiler_params=_mosaic_params(),
    )(*args)


# ------------------------------ JAX-side glue ------------------------------ #

def _im2col(x_nhwc, ksize, stride, padding):
    n, h, w, c = x_nhwc.shape
    xp = jnp.pad(x_nhwc, ((0, 0), (padding, padding), (padding, padding), (0, 0)))
    ho = (h + 2 * padding - ksize) // stride + 1
    wo = (w + 2 * padding - ksize) // stride + 1
    cols = []
    for kh in range(ksize):
        for kw in range(ksize):
            patch = xp[:, kh:kh + stride * (ho - 1) + 1:stride,
                          kw:kw + stride * (wo - 1) + 1:stride, :]
            cols.append(patch.reshape(n * ho * wo, c))
    return jnp.concatenate(cols, axis=1), (n, ho, wo)


def _conv_w_to_mat(w_oihw, k_pad, c_pad):
    # (Cout, Cin, kh, kw) -> (kh*kw*Cin, Cout), zero-padded, bf16 for the MXU.
    cout = w_oihw.shape[0]
    mat = jnp.transpose(w_oihw, (2, 3, 1, 0)).reshape(-1, cout)
    mat = jnp.pad(mat, ((0, k_pad - mat.shape[0]), (0, c_pad - cout)))
    return mat.astype(jnp.bfloat16)


def _pad2d(a, rows, cols, dtype):
    return jnp.pad(a, ((0, rows - a.shape[0]), (0, cols - a.shape[1]))).astype(dtype)


def _bn_scale_shift(ssum, ssq, m_true, gamma, beta, c_pad):
    # Tiny per-channel finalize of the in-kernel reduction (C-sized work):
    # fuse gamma/beta/mean/var into one scale & shift for a 1-FMA epilogue.
    s = jnp.sum(ssum, axis=(0, 1))
    q = jnp.sum(ssq, axis=(0, 1))
    mean = s / m_true
    var = jnp.maximum(q / m_true - mean * mean, 0.0)
    inv = jax.lax.rsqrt(var + _EPS)
    g = jnp.pad(gamma.astype(jnp.float32), (0, c_pad - gamma.shape[0]))
    b = jnp.pad(beta.astype(jnp.float32), (0, c_pad - beta.shape[0]))
    scale = g * inv
    shift = b - mean * scale
    return scale.reshape(1, c_pad), shift.reshape(1, c_pad)


def basic_block_forward(x_nchw, params, stride):
    """BasicBlock.forward: relu(bn2(conv2(relu(bn1(conv1(x))))) + shortcut(x))."""
    in_planes = x_nchw.shape[1]
    planes = params["w1"].shape[0]
    has_sc_conv = (stride != 1) or (in_planes != planes)

    x = jnp.transpose(x_nchw, (0, 2, 3, 1)).astype(jnp.float32)   # NCHW -> NHWC
    n, h, w, _ = x.shape
    x_bf = x.astype(jnp.bfloat16)

    # Output spatial size (conv1 does all the striding, conv2 is stride 1).
    ho = (h + 2 - 3) // stride + 1
    wo = (w + 2 - 3) // stride + 1
    m = n * ho * wo

    tm = 512 if m >= 512 else _round_up(m, 16)
    m_pad = _round_up(m, tm)
    c_pad = _round_up(planes, _LANE)
    k1_pad = _round_up(9 * in_planes, _LANE)
    k2_pad = _round_up(9 * planes, _LANE)
    ksc_pad = _round_up(in_planes, _LANE)

    # ---- conv1 (3x3, stride, pad 1) + bn1 + relu --------------------------- #
    p1, _ = _im2col(x_bf, 3, stride, 1)
    p1 = _pad2d(p1, m_pad, k1_pad, jnp.bfloat16)
    w1 = _conv_w_to_mat(params["w1"], k1_pad, c_pad)
    y1, y1s, y1q = _matmul_stats(p1, w1, tm)
    sc1, sh1 = _bn_scale_shift(y1s, y1q, m, params["g1"], params["b1"], c_pad)
    h1 = _bn_apply(y1, sc1, sh1, tm, relu=True, out_dtype=jnp.bfloat16)
    h1_nhwc = h1[:m, :planes].reshape(n, ho, wo, planes)

    # ---- conv2 (3x3, stride 1, pad 1) + bn2 + shortcut + relu -------------- #
    p2, _ = _im2col(h1_nhwc, 3, 1, 1)
    p2 = _pad2d(p2, m_pad, k2_pad, jnp.bfloat16)
    w2 = _conv_w_to_mat(params["w2"], k2_pad, c_pad)

    if has_sc_conv:
        # Projection shortcut: 1x1 conv(stride) + BN, fused with conv2.
        xs = x_bf[:, ::stride, ::stride, :].reshape(m, in_planes)
        xs = _pad2d(xs, m_pad, ksc_pad, jnp.bfloat16)
        wsc = _conv_w_to_mat(params["wsc"], ksc_pad, c_pad)
        y2, ysc, y2s, y2q, zs, zq = _matmul_stats_dual(p2, w2, xs, wsc, tm)
        sc2, sh2 = _bn_scale_shift(y2s, y2q, m, params["g2"], params["b2"], c_pad)
        scs, shs = _bn_scale_shift(zs, zq, m, params["gsc"], params["bsc"], c_pad)
        out = _bn_apply(y2, sc2, sh2, tm, relu=True, dual=(ysc, scs, shs))
    else:
        # Identity shortcut.
        y2, y2s, y2q = _matmul_stats(p2, w2, tm)
        sc2, sh2 = _bn_scale_shift(y2s, y2q, m, params["g2"], params["b2"], c_pad)
        res = _pad2d(x.reshape(m, in_planes), m_pad, c_pad, jnp.float32)
        out = _bn_apply(y2, sc2, sh2, tm, relu=True, residual=res)

    out = out[:m, :planes].reshape(n, ho, wo, planes)
    return jnp.transpose(out, (0, 3, 1, 2))   # NHWC -> NCHW


# ---------------------------- pure-JAX reference ---------------------------- #

def _ref_forward(x, params, stride):
    def conv(xx, ww, s, p):
        return jax.lax.conv_general_dilated(
            xx, ww, (s, s), [(p, p), (p, p)],
            dimension_numbers=("NCHW", "OIHW", "NCHW"))

    def bn(xx, g, b):
        mean = xx.mean(axis=(0, 2, 3), keepdims=True)
        var = ((xx - mean) ** 2).mean(axis=(0, 2, 3), keepdims=True)
        return ((xx - mean) * jax.lax.rsqrt(var + _EPS) * g.reshape(1, -1, 1, 1)
                + b.reshape(1, -1, 1, 1))

    in_planes = x.shape[1]
    planes = params["w1"].shape[0]
    out = jax.nn.relu(bn(conv(x, params["w1"], stride, 1), params["g1"], params["b1"]))
    out = bn(conv(out, params["w2"], 1, 1), params["g2"], params["b2"])
    if stride != 1 or in_planes != planes:
        sc = bn(conv(x, params["wsc"], stride, 0), params["gsc"], params["bsc"])
    else:
        sc = x
    return jax.nn.relu(out + sc)


# ----------------------------------- main ----------------------------------- #

def _make_params(key, in_planes, planes, with_shortcut):
    ks = jax.random.split(key, 9)
    params = {
        "w1": 0.1 * jax.random.normal(ks[0], (planes, in_planes, 3, 3), jnp.float32),
        "g1": 1.0 + 0.1 * jax.random.normal(ks[1], (planes,), jnp.float32),
        "b1": 0.1 * jax.random.normal(ks[2], (planes,), jnp.float32),
        "w2": 0.1 * jax.random.normal(ks[3], (planes, planes, 3, 3), jnp.float32),
        "g2": 1.0 + 0.1 * jax.random.normal(ks[4], (planes,), jnp.float32),
        "b2": 0.1 * jax.random.normal(ks[5], (planes,), jnp.float32),
    }
    if with_shortcut:
        params["wsc"] = 0.1 * jax.random.normal(ks[6], (planes, in_planes, 1, 1), jnp.float32)
        params["gsc"] = 1.0 + 0.1 * jax.random.normal(ks[7], (planes,), jnp.float32)
        params["bsc"] = 0.1 * jax.random.normal(ks[8], (planes,), jnp.float32)
    return params


if __name__ == "__main__":
    key = jax.random.PRNGKey(0)
    k_x1, k_p1, k_x2, k_p2 = jax.random.split(key, 4)
    fwd = jax.jit(basic_block_forward, static_argnums=(2,))

    # Tolerance reflects bf16 MXU inputs (f32 accumulation / BN math); real
    # bugs produce O(1) errors, well outside this band.
    RTOL = ATOL = 3e-2

    # Case 1: projection shortcut (stride 2, channel change) — fused dual path.
    n, h, w = 2, 16, 16
    in_planes, planes, stride = 4, 8, 2
    x = jax.random.normal(k_x1, (n, in_planes, h, w), jnp.float32)
    params = _make_params(k_p1, in_planes, planes, True)
    out = jax.block_until_ready(fwd(x, params, stride))
    ref = jax.block_until_ready(_ref_forward(x, params, stride))
    assert out.shape == (n, planes, h // stride, w // stride), out.shape
    np.testing.assert_allclose(np.asarray(out), np.asarray(ref), rtol=RTOL, atol=ATOL)

    # Case 2: identity shortcut (stride 1, same channels).
    in_planes = planes = 8
    stride = 1
    x = jax.random.normal(k_x2, (n, in_planes, h, w), jnp.float32)
    params = _make_params(k_p2, in_planes, planes, False)
    out = jax.block_until_ready(fwd(x, params, stride))
    ref = jax.block_until_ready(_ref_forward(x, params, stride))
    assert out.shape == (n, planes, h, w), out.shape
    np.testing.assert_allclose(np.asarray(out), np.asarray(ref), rtol=RTOL, atol=ATOL)

    print("KERNEL_OK")
</pallas_src>

<mosaic_0001>
module attributes {stable_mosaic.version = 11 : i64} {
  func.func @_mm_stats_kernel(%arg0: i32, %arg1: memref<128x128xbf16, #tpu.memory_space<vmem>>, %arg2: memref<128x128xbf16, #tpu.memory_space<vmem>>, %arg3: memref<128x128xf32, #tpu.memory_space<vmem>>, %arg4: memref<1x1x128xf32, #tpu.memory_space<vmem>>, %arg5: memref<1x1x128xf32, #tpu.memory_space<vmem>>) attributes {dimension_semantics = [#tpu.dimension_semantics<parallel>], iteration_bounds = array<i64: 1>, scalar_prefetch = 0 : i64, scratch_operands = 0 : i64, tpu.core_type = #tpu.core_type<tc>, window_params = [{transform_indices = @transform_0, window_bounds = array<i64: 128, 128>}, {pipeline_mode = #tpu.pipeline_mode<synchronous>, transform_indices = @transform_1, window_bounds = array<i64: 128, 128>}, {transform_indices = @transform_2, window_bounds = array<i64: 128, 128>}, {transform_indices = @transform_3, window_bounds = array<i64: 1, 1, 128>}, {transform_indices = @transform_4, window_bounds = array<i64: 1, 1, 128>}]} {
    %c0 = arith.constant 0 : index
    %c0_0 = arith.constant 0 : index
    %0 = vector.load %arg1[%c0, %c0_0] : memref<128x128xbf16, #tpu.memory_space<vmem>>, vector<128x128xbf16>
    %c0_1 = arith.constant 0 : index
    %c0_2 = arith.constant 0 : index
    %1 = vector.load %arg2[%c0_1, %c0_2] : memref<128x128xbf16, #tpu.memory_space<vmem>>, vector<128x128xbf16>
    %cst = arith.constant dense<0.000000e+00> : vector<128x128xf32>
    %2 = tpu.matmul %0, %1, %cst {dimension_numbers = #tpu.dot_dimension_numbers<[1], [0], [0], [1], [0, 0, 1, 1], [], []>} : vector<128x128xbf16>, vector<128x128xbf16>, vector<128x128xf32> -> vector<128x128xf32>
    %c0_3 = arith.constant 0 : index
    %c0_4 = arith.constant 0 : index
    %3 = vector.load %arg3[%c0_3, %c0_4] : memref<128x128xf32, #tpu.memory_space<vmem>>, vector<128x128xf32>
    tpu.vector_store %arg3[%c0_3, %c0_4], %2 {strides = array<i32>} : memref<128x128xf32, #tpu.memory_space<vmem>>, vector<128x128xf32>,
    %cst_5 = arith.constant dense<0.000000e+00> : vector<128xf32>
    %4 = vector.multi_reduction <add>, %2, %cst_5 [0] : vector<128x128xf32> to vector<128xf32>
    %5 = vector.shape_cast %4 : vector<128xf32> to vector<1x128xf32>
    %6 = vector.shape_cast %5 : vector<1x128xf32> to vector<1x1x128xf32>
    %c0_6 = arith.constant 0 : index
    %c0_7 = arith.constant 0 : index
    %c0_8 = arith.constant 0 : index
    %7 = vector.load %arg4[%c0_6, %c0_7, %c0_8] : memref<1x1x128xf32, #tpu.memory_space<vmem>>, vector<1x1x128xf32>
    tpu.vector_store %arg4[%c0_6, %c0_7, %c0_8], %6 {strides = array<i32>} : memref<1x1x128xf32, #tpu.memory_space<vmem>>, vector<1x1x128xf32>,
    %8 = arith.mulf %2, %2 : vector<128x128xf32>
    %cst_9 = arith.constant dense<0.000000e+00> : vector<128xf32>
    %9 = vector.multi_reduction <add>, %8, %cst_9 [0] : vector<128x128xf32> to vector<128xf32>
    %10 = vector.shape_cast %9 : vector<128xf32> to vector<1x128xf32>
    %11 = vector.shape_cast %10 : vector<1x128xf32> to vector<1x1x128xf32>
    %c0_10 = arith.constant 0 : index
    %c0_11 = arith.constant 0 : index
    %c0_12 = arith.constant 0 : index
    %12 = vector.load %arg5[%c0_10, %c0_11, %c0_12] : memref<1x1x128xf32, #tpu.memory_space<vmem>>, vector<1x1x128xf32>
    tpu.vector_store %arg5[%c0_10, %c0_11, %c0_12], %11 {strides = array<i32>} : memref<1x1x128xf32, #tpu.memory_space<vmem>>, vector<1x1x128xf32>,
    return
  }
  func.func @transform_0(%arg0: i32) -> (i32, i32) {
    %c0_i32 = arith.constant 0 : i32
    %c0_i32_0 = arith.constant 0 : i32
    return %arg0, %c0_i32 : i32, i32
  }
  func.func @transform_1(%arg0: i32) -> (i32, i32) {
    %c0_i32 = arith.constant 0 : i32
    %c0_i32_0 = arith.constant 0 : i32
    %c0_i32_1 = arith.constant 0 : i32
    return %c0_i32, %c0_i32_0 : i32, i32
  }
  func.func @transform_2(%arg0: i32) -> (i32, i32) {
    %c0_i32 = arith.constant 0 : i32
    %c0_i32_0 = arith.constant 0 : i32
    return %arg0, %c0_i32 : i32, i32
  }
  func.func @transform_3(%arg0: i32) -> (i32, i32, i32) {
    %c0_i32 = arith.constant 0 : i32
    %c0_i32_0 = arith.constant 0 : i32
    %c0_i32_1 = arith.constant 0 : i32
    return %arg0, %c0_i32, %c0_i32_0 : i32, i32, i32
  }
  func.func @transform_4(%arg0: i32) -> (i32, i32, i32) {
    %c0_i32 = arith.constant 0 : i32
    %c0_i32_0 = arith.constant 0 : i32
    %c0_i32_1 = arith.constant 0 : i32
    return %arg0, %c0_i32, %c0_i32_0 : i32, i32, i32
  }
}

module attributes {stable_mosaic.version = 11 : i64} {
  func.func @_bn_act_kernel(%arg0: i32, %arg1: memref<128x128xf32, #tpu.memory_space<vmem>>, %arg2: memref<1x128xf32, #tpu.memory_space<vmem>>, %arg3: memref<1x128xf32, #tpu.memory_space<vmem>>, %arg4: memref<128x128xbf16, #tpu.memory_space<vmem>>) attributes {dimension_semantics = [#tpu.dimension_semantics<parallel>], iteration_bounds = array<i64: 1>, scalar_prefetch = 0 : i64, scratch_operands = 0 : i64, tpu.core_type = #tpu.core_type<tc>, window_params = [{transform_indices = @transform_0, window_bounds = array<i64: 128, 128>}, {pipeline_mode = #tpu.pipeline_mode<synchronous>, transform_indices = @transform_1, window_bounds = array<i64: 1, 128>}, {pipeline_mode = #tpu.pipeline_mode<synchronous>, transform_indices = @transform_2, window_bounds = array<i64: 1, 128>}, {transform_indices = @transform_3, window_bounds = array<i64: 128, 128>}]} {
    %c0 = arith.constant 0 : index
    %c0_0 = arith.constant 0 : index
    %0 = vector.load %arg1[%c0, %c0_0] : memref<128x128xf32, #tpu.memory_space<vmem>>, vector<128x128xf32>
    %c0_1 = arith.constant 0 : index
    %c0_2 = arith.constant 0 : index
    %1 = vector.load %arg2[%c0_1, %c0_2] : memref<1x128xf32, #tpu.memory_space<vmem>>, vector<1x128xf32>
    %2 = vector.broadcast %1 : vector<1x128xf32> to vector<128x128xf32>
    %3 = arith.mulf %0, %2 : vector<128x128xf32>
    %c0_3 = arith.constant 0 : index
    %c0_4 = arith.constant 0 : index
    %4 = vector.load %arg3[%c0_3, %c0_4] : memref<1x128xf32, #tpu.memory_space<vmem>>, vector<1x128xf32>
    %5 = vector.broadcast %4 : vector<1x128xf32> to vector<128x128xf32>
    %6 = arith.addf %3, %5 : vector<128x128xf32>
    %cst = arith.constant 0.000000e+00 : f32
    %7 = vector.broadcast %cst : f32 to vector<128x128xf32>
    %8 = arith.maximumf %6, %7 : vector<128x128xf32>
    %9 = arith.truncf %8 : vector<128x128xf32> to vector<128x128xbf16>
    %c0_5 = arith.constant 0 : index
    %c0_6 = arith.constant 0 : index
    %10 = vector.load %arg4[%c0_5, %c0_6] : memref<128x128xbf16, #tpu.memory_space<vmem>>, vector<128x128xbf16>
    tpu.vector_store %arg4[%c0_5, %c0_6], %9 {strides = array<i32>} : memref<128x128xbf16, #tpu.memory_space<vmem>>, vector<128x128xbf16>,
    return
  }
  func.func @transform_0(%arg0: i32) -> (i32, i32) {
    %c0_i32 = arith.constant 0 : i32
    %c0_i32_0 = arith.constant 0 : i32
    return %arg0, %c0_i32 : i32, i32
  }
  func.func @transform_1(%arg0: i32) -> (i32, i32) {
    %c0_i32 = arith.constant 0 : i32
    %c0_i32_0 = arith.constant 0 : i32
    %c0_i32_1 = arith.constant 0 : i32
    return %c0_i32, %c0_i32_0 : i32, i32
  }
  func.func @transform_2(%arg0: i32) -> (i32, i32) {
    %c0_i32 = arith.constant 0 : i32
    %c0_i32_0 = arith.constant 0 : i32
    %c0_i32_1 = arith.constant 0 : i32
    return %c0_i32, %c0_i32_0 : i32, i32
  }
  func.func @transform_3(%arg0: i32) -> (i32, i32) {
    %c0_i32 = arith.constant 0 : i32
    %c0_i32_0 = arith.constant 0 : i32
    return %arg0, %c0_i32 : i32, i32
  }
}

module attributes {stable_mosaic.version = 11 : i64} {
  func.func @_bn_dual_add_relu_kernel(%arg0: i32, %arg1: memref<128x128xf32, #tpu.memory_space<vmem>>, %arg2: memref<1x128xf32, #tpu.memory_space<vmem>>, %arg3: memref<1x128xf32, #tpu.memory_space<vmem>>, %arg4: memref<128x128xf32, #tpu.memory_space<vmem>>, %arg5: memref<1x128xf32, #tpu.memory_space<vmem>>, %arg6: memref<1x128xf32, #tpu.memory_space<vmem>>, %arg7: memref<128x128xf32, #tpu.memory_space<vmem>>) attributes {dimension_semantics = [#tpu.dimension_semantics<parallel>], iteration_bounds = array<i64: 1>, scalar_prefetch = 0 : i64, scratch_operands = 0 : i64, tpu.core_type = #tpu.core_type<tc>, window_params = [{transform_indices = @transform_0, window_bounds = array<i64: 128, 128>}, {pipeline_mode = #tpu.pipeline_mode<synchronous>, transform_indices = @transform_1, window_bounds = array<i64: 1, 128>}, {pipeline_mode = #tpu.pipeline_mode<synchronous>, transform_indices = @transform_2, window_bounds = array<i64: 1, 128>}, {transform_indices = @transform_3, window_bounds = array<i64: 128, 128>}, {pipeline_mode = #tpu.pipeline_mode<synchronous>, transform_indices = @transform_4, window_bounds = array<i64: 1, 128>}, {pipeline_mode = #tpu.pipeline_mode<synchronous>, transform_indices = @transform_5, window_bounds = array<i64: 1, 128>}, {transform_indices = @transform_6, window_bounds = array<i64: 128, 128>}]} {
    %c0 = arith.constant 0 : index
    %c0_0 = arith.constant 0 : index
    %0 = vector.load %arg1[%c0, %c0_0] : memref<128x128xf32, #tpu.memory_space<vmem>>, vector<128x128xf32>
    %c0_1 = arith.constant 0 : index
    %c0_2 = arith.constant 0 : index
    %1 = vector.load %arg2[%c0_1, %c0_2] : memref<1x128xf32, #tpu.memory_space<vmem>>, vector<1x128xf32>
    %2 = vector.broadcast %1 : vector<1x128xf32> to vector<128x128xf32>
    %3 = arith.mulf %0, %2 : vector<128x128xf32>
    %c0_3 = arith.constant 0 : index
    %c0_4 = arith.constant 0 : index
    %4 = vector.load %arg3[%c0_3, %c0_4] : memref<1x128xf32, #tpu.memory_space<vmem>>, vector<1x128xf32>
    %5 = vector.broadcast %4 : vector<1x128xf32> to vector<128x128xf32>
    %6 = arith.addf %3, %5 : vector<128x128xf32>
    %c0_5 = arith.constant 0 : index
    %c0_6 = arith.constant 0 : index
    %7 = vector.load %arg4[%c0_5, %c0_6] : memref<128x128xf32, #tpu.memory_space<vmem>>, vector<128x128xf32>
    %c0_7 = arith.constant 0 : index
    %c0_8 = arith.constant 0 : index
    %8 = vector.load %arg5[%c0_7, %c0_8] : memref<1x128xf32, #tpu.memory_space<vmem>>, vector<1x128xf32>
    %9 = vector.broadcast %8 : vector<1x128xf32> to vector<128x128xf32>
    %10 = arith.mulf %7, %9 : vector<128x128xf32>
    %c0_9 = arith.constant 0 : index
    %c0_10 = arith.constant 0 : index
    %11 = vector.load %arg6[%c0_9, %c0_10] : memref<1x128xf32, #tpu.memory_space<vmem>>, vector<1x128xf32>
    %12 = vector.broadcast %11 : vector<1x128xf32> to vector<128x128xf32>
    %13 = arith.addf %10, %12 : vector<128x128xf32>
    %14 = arith.addf %6, %13 : vector<128x128xf32>
    %cst = arith.constant 0.000000e+00 : f32
    %15 = vector.broadcast %cst : f32 to vector<128x128xf32>
    %16 = arith.maximumf %14, %15 : vector<128x128xf32>
    %c0_11 = arith.constant 0 : index
    %c0_12 = arith.constant 0 : index
    %17 = vector.load %arg7[%c0_11, %c0_12] : memref<128x128xf32, #tpu.memory_space<vmem>>, vector<128x128xf32>
    tpu.vector_store %arg7[%c0_11, %c0_12], %16 {strides = array<i32>} : memref<128x128xf32, #tpu.memory_space<vmem>>, vector<128x128xf32>,
    return
  }
  func.func @transform_0(%arg0: i32) -> (i32, i32) {
    %c0_i32 = arith.constant 0 : i32
    %c0_i32_0 = arith.constant 0 : i32
    return %arg0, %c0_i32 : i32, i32
  }
  func.func @transform_1(%arg0: i32) -> (i32, i32) {
    %c0_i32 = arith.constant 0 : i32
    %c0_i32_0 = arith.constant 0 : i32
    %c0_i32_1 = arith.constant 0 : i32
    return %c0_i32, %c0_i32_0 : i32, i32
  }
  func.func @transform_2(%arg0: i32) -> (i32, i32) {
    %c0_i32 = arith.constant 0 : i32
    %c0_i32_0 = arith.constant 0 : i32
    %c0_i32_1 = arith.constant 0 : i32
    return %c0_i32, %c0_i32_0 : i32, i32
  }
  func.func @transform_3(%arg0: i32) -> (i32, i32) {
    %c0_i32 = arith.constant 0 : i32
    %c0_i32_0 = arith.constant 0 : i32
    return %arg0, %c0_i32 : i32, i32
  }
  func.func @transform_4(%arg0: i32) -> (i32, i32) {
    %c0_i32 = arith.constant 0 : i32
    %c0_i32_0 = arith.constant 0 : i32
    %c0_i32_1 = arith.constant 0 : i32
    return %c0_i32, %c0_i32_0 : i32, i32
  }
  func.func @transform_5(%arg0: i32) -> (i32, i32) {
    %c0_i32 = arith.constant 0 : i32
    %c0_i32_0 = arith.constant 0 : i32
    %c0_i32_1 = arith.constant 0 : i32
    return %c0_i32, %c0_i32_0 : i32, i32
  }
  func.func @transform_6(%arg0: i32) -> (i32, i32) {
    %c0_i32 = arith.constant 0 : i32
    %c0_i32_0 = arith.constant 0 : i32
    return %arg0, %c0_i32 : i32, i32
  }
}

module attributes {stable_mosaic.version = 11 : i64} {
  func.func @_mm2_stats_kernel(%arg0: i32, %arg1: memref<128x128xbf16, #tpu.memory_space<vmem>>, %arg2: memref<128x128xbf16, #tpu.memory_space<vmem>>, %arg3: memref<128x128xbf16, #tpu.memory_space<vmem>>, %arg4: memref<128x128xbf16, #tpu.memory_space<vmem>>, %arg5: memref<128x128xf32, #tpu.memory_space<vmem>>, %arg6: memref<128x128xf32, #tpu.memory_space<vmem>>, %arg7: memref<1x1x128xf32, #tpu.memory_space<vmem>>, %arg8: memref<1x1x128xf32, #tpu.memory_space<vmem>>, %arg9: memref<1x1x128xf32, #tpu.memory_space<vmem>>, %arg10: memref<1x1x128xf32, #tpu.memory_space<vmem>>) attributes {dimension_semantics = [#tpu.dimension_semantics<parallel>], iteration_bounds = array<i64: 1>, scalar_prefetch = 0 : i64, scratch_operands = 0 : i64, tpu.core_type = #tpu.core_type<tc>, window_params = [{transform_indices = @transform_0, window_bounds = array<i64: 128, 128>}, {pipeline_mode = #tpu.pipeline_mode<synchronous>, transform_indices = @transform_1, window_bounds = array<i64: 128, 128>}, {transform_indices = @transform_2, window_bounds = array<i64: 128, 128>}, {pipeline_mode = #tpu.pipeline_mode<synchronous>, transform_indices = @transform_3, window_bounds = array<i64: 128, 128>}, {transform_indices = @transform_4, window_bounds = array<i64: 128, 128>}, {transform_indices = @transform_5, window_bounds = array<i64: 128, 128>}, {transform_indices = @transform_6, window_bounds = array<i64: 1, 1, 128>}, {transform_indices = @transform_7, window_bounds = array<i64: 1, 1, 128>}, {transform_indices = @transform_8, window_bounds = array<i64: 1, 1, 128>}, {transform_indices = @transform_9, window_bounds = array<i64: 1, 1, 128>}]} {
    %c0 = arith.constant 0 : index
    %c0_0 = arith.constant 0 : index
    %0 = vector.load %arg1[%c0, %c0_0] : memref<128x128xbf16, #tpu.memory_space<vmem>>, vector<128x128xbf16>
    %c0_1 = arith.constant 0 : index
    %c0_2 = arith.constant 0 : index
    %1 = vector.load %arg2[%c0_1, %c0_2] : memref<128x128xbf16, #tpu.memory_space<vmem>>, vector<128x128xbf16>
    %cst = arith.constant dense<0.000000e+00> : vector<128x128xf32>
    %2 = tpu.matmul %0, %1, %cst {dimension_numbers = #tpu.dot_dimension_numbers<[1], [0], [0], [1], [0, 0, 1, 1], [], []>} : vector<128x128xbf16>, vector<128x128xbf16>, vector<128x128xf32> -> vector<128x128xf32>
    %c0_3 = arith.constant 0 : index
    %c0_4 = arith.constant 0 : index
    %3 = vector.load %arg3[%c0_3, %c0_4] : memref<128x128xbf16, #tpu.memory_space<vmem>>, vector<128x128xbf16>
    %c0_5 = arith.constant 0 : index
    %c0_6 = arith.constant 0 : index
    %4 = vector.load %arg4[%c0_5, %c0_6] : memref<128x128xbf16, #tpu.memory_space<vmem>>, vector<128x128xbf16>
    %cst_7 = arith.constant dense<0.000000e+00> : vector<128x128xf32>
    %5 = tpu.matmul %3, %4, %cst_7 {dimension_numbers = #tpu.dot_dimension_numbers<[1], [0], [0], [1], [0, 0, 1, 1], [], []>} : vector<128x128xbf16>, vector<128x128xbf16>, vector<128x128xf32> -> vector<128x128xf32>
    %c0_8 = arith.constant 0 : index
    %c0_9 = arith.constant 0 : index
    %6 = vector.load %arg5[%c0_8, %c0_9] : memref<128x128xf32, #tpu.memory_space<vmem>>, vector<128x128xf32>
    tpu.vector_store %arg5[%c0_8, %c0_9], %2 {strides = array<i32>} : memref<128x128xf32, #tpu.memory_space<vmem>>, vector<128x128xf32>,
    %c0_10 = arith.constant 0 : index
    %c0_11 = arith.constant 0 : index
    %7 = vector.load %arg6[%c0_10, %c0_11] : memref<128x128xf32, #tpu.memory_space<vmem>>, vector<128x128xf32>
    tpu.vector_store %arg6[%c0_10, %c0_11], %5 {strides = array<i32>} : memref<128x128xf32, #tpu.memory_space<vmem>>, vector<128x128xf32>,
    %cst_12 = arith.constant dense<0.000000e+00> : vector<128xf32>
    %8 = vector.multi_reduction <add>, %2, %cst_12 [0] : vector<128x128xf32> to vector<128xf32>
    %9 = vector.shape_cast %8 : vector<128xf32> to vector<1x128xf32>
    %10 = vector.shape_cast %9 : vector<1x128xf32> to vector<1x1x128xf32>
    %c0_13 = arith.constant 0 : index
    %c0_14 = arith.constant 0 : index
    %c0_15 = arith.constant 0 : index
    %11 = vector.load %arg7[%c0_13, %c0_14, %c0_15] : memref<1x1x128xf32, #tpu.memory_space<vmem>>, vector<1x1x128xf32>
    tpu.vector_store %arg7[%c0_13, %c0_14, %c0_15], %10 {strides = array<i32>} : memref<1x1x128xf32, #tpu.memory_space<vmem>>, vector<1x1x128xf32>,
    %12 = arith.mulf %2, %2 : vector<128x128xf32>
    %cst_16 = arith.constant dense<0.000000e+00> : vector<128xf32>
    %13 = vector.multi_reduction <add>, %12, %cst_16 [0] : vector<128x128xf32> to vector<128xf32>
    %14 = vector.shape_cast %13 : vector<128xf32> to vector<1x128xf32>
    %15 = vector.shape_cast %14 : vector<1x128xf32> to vector<1x1x128xf32>
    %c0_17 = arith.constant 0 : index
    %c0_18 = arith.constant 0 : index
    %c0_19 = arith.constant 0 : index
    %16 = vector.load %arg8[%c0_17, %c0_18, %c0_19] : memref<1x1x128xf32, #tpu.memory_space<vmem>>, vector<1x1x128xf32>
    tpu.vector_store %arg8[%c0_17, %c0_18, %c0_19], %15 {strides = array<i32>} : memref<1x1x128xf32, #tpu.memory_space<vmem>>, vector<1x1x128xf32>,
    %cst_20 = arith.constant dense<0.000000e+00> : vector<128xf32>
    %17 = vector.multi_reduction <add>, %5, %cst_20 [0] : vector<128x128xf32> to vector<128xf32>
    %18 = vector.shape_cast %17 : vector<128xf32> to vector<1x128xf32>
    %19 = vector.shape_cast %18 : vector<1x128xf32> to vector<1x1x128xf32>
    %c0_21 = arith.constant 0 : index
    %c0_22 = arith.constant 0 : index
    %c0_23 = arith.constant 0 : index
    %20 = vector.load %arg9[%c0_21, %c0_22, %c0_23] : memref<1x1x128xf32, #tpu.memory_space<vmem>>, vector<1x1x128xf32>
    tpu.vector_store %arg9[%c0_21, %c0_22, %c0_23], %19 {strides = array<i32>} : memref<1x1x128xf32, #tpu.memory_space<vmem>>, vector<1x1x128xf32>,
    %21 = arith.mulf %5, %5 : vector<128x128xf32>
    %cst_24 = arith.constant dense<0.000000e+00> : vector<128xf32>
    %22 = vector.multi_reduction <add>, %21, %cst_24 [0] : vector<128x128xf32> to vector<128xf32>
    %23 = vector.shape_cast %22 : vector<128xf32> to vector<1x128xf32>
    %24 = vector.shape_cast %23 : vector<1x128xf32> to vector<1x1x128xf32>
    %c0_25 = arith.constant 0 : index
    %c0_26 = arith.constant 0 : index
    %c0_27 = arith.constant 0 : index
    %25 = vector.load %arg10[%c0_25, %c0_26, %c0_27] : memref<1x1x128xf32, #tpu.memory_space<vmem>>, vector<1x1x128xf32>
    tpu.vector_store %arg10[%c0_25, %c0_26, %c0_27], %24 {strides = array<i32>} : memref<1x1x128xf32, #tpu.memory_space<vmem>>, vector<1x1x128xf32>,
    return
  }
  func.func @transform_0(%arg0: i32) -> (i32, i32) {
    %c0_i32 = arith.constant 0 : i32
    %c0_i32_0 = arith.constant 0 : i32
    return %arg0, %c0_i32 : i32, i32
  }
  func.func @transform_1(%arg0: i32) -> (i32, i32) {
    %c0_i32 = arith.constant 0 : i32
    %c0_i32_0 = arith.constant 0 : i32
    %c0_i32_1 = arith.constant 0 : i32
    return %c0_i32, %c0_i32_0 : i32, i32
  }
  func.func @transform_2(%arg0: i32) -> (i32, i32) {
    %c0_i32 = arith.constant 0 : i32
    %c0_i32_0 = arith.constant 0 : i32
    return %arg0, %c0_i32 : i32, i32
  }
  func.func @transform_3(%arg0: i32) -> (i32, i32) {
    %c0_i32 = arith.constant 0 : i32
    %c0_i32_0 = arith.constant 0 : i32
    %c0_i32_1 = arith.constant 0 : i32
    return %c0_i32, %c0_i32_0 : i32, i32
  }
  func.func @transform_4(%arg0: i32) -> (i32, i32) {
    %c0_i32 = arith.constant 0 : i32
    %c0_i32_0 = arith.constant 0 : i32
    return %arg0, %c0_i32 : i32, i32
  }
  func.func @transform_5(%arg0: i32) -> (i32, i32) {
    %c0_i32 = arith.constant 0 : i32
    %c0_i32_0 = arith.constant 0 : i32
    return %arg0, %c0_i32 : i32, i32
  }
  func.func @transform_6(%arg0: i32) -> (i32, i32, i32) {
    %c0_i32 = arith.constant 0 : i32
    %c0_i32_0 = arith.constant 0 : i32
    %c0_i32_1 = arith.constant 0 : i32
    return %arg0, %c0_i32, %c0_i32_0 : i32, i32, i32
  }
  func.func @transform_7(%arg0: i32) -> (i32, i32, i32) {
    %c0_i32 = arith.constant 0 : i32
    %c0_i32_0 = arith.constant 0 : i32
    %c0_i32_1 = arith.constant 0 : i32
    return %arg0, %c0_i32, %c0_i32_0 : i32, i32, i32
  }
  func.func @transform_8(%arg0: i32) -> (i32, i32, i32) {
    %c0_i32 = arith.constant 0 : i32
    %c0_i32_0 = arith.constant 0 : i32
    %c0_i32_1 = arith.constant 0 : i32
    return %arg0, %c0_i32, %c0_i32_0 : i32, i32, i32
  }
  func.func @transform_9(%arg0: i32) -> (i32, i32, i32) {
    %c0_i32 = arith.constant 0 : i32
    %c0_i32_0 = arith.constant 0 : i32
    %c0_i32_1 = arith.constant 0 : i32
    return %arg0, %c0_i32, %c0_i32_0 : i32, i32, i32
  }
}

</mosaic_0001>

<llo_original>
// kernel: basic_block_forward.4
$region0: #{basic_block_forward.4}
  #allocation0 [shape = 'u32[]', space=smem, size = 0x4, offset = 0x4, fixed_abs, tag = 'smem constant byte address 0x4 - core index']
  #allocation1 [shape = 'u32[144,128]{1,0:T(1,128)}', space=vmem, size = 0x12000, scoped, tag = 'internal scratch']
  %s0 = inlined_call_operand.hbm [shape: bf16[128,128], index: 0, kind: input, shape index: {}]
  %s1 = inlined_call_operand.hbm [shape: bf16[128,128], index: 1, kind: input, shape index: {}]
  %s2 = inlined_call_operand.hbm [shape: f32[128,128], index: 2, kind: output, shape index: {0}]
  %s3 = inlined_call_operand.hbm [shape: f32[1,1,128], index: 3, kind: output, shape index: {1}]
  %s4 = inlined_call_operand.hbm [shape: f32[1,1,128], index: 4, kind: output, shape index: {2}]
  %5 = xla_tuple %s2, %s3, %s4
  %s6 = sld [smem:[#allocation0]]
  $region42: #{basic_block_forward.4} parent=0
    _
  %s8 = ssub.s32 1, %s6
  %s9 = scalar_select 0, %s8, %s6
  $region1: #{basic_block_forward.4} parent=0
    #allocation2 [shape = 'u8[32768]{0}', space=vmem, size = 0x8000, scoped, tag = 'input window, operand 0, single buffered']
    #allocation3 [shape = 's32[1]{0}', space=sflag, size = 0x4, scoped, tag = 'scoped memory for basic_block_forward.4']
    #allocation4 [shape = 's32[1]{0}', space=sflag, size = 0x4, scoped, tag = 'scoped memory for basic_block_forward.4']
    #allocation5 [shape = 'u8[32768]{0}', space=vmem, size = 0x8000, scoped, tag = 'input window, operand 1, single buffered']
    #allocation6 [shape = 's32[1]{0}', space=sflag, size = 0x4, scoped, tag = 'scoped memory for basic_block_forward.4']
    #allocation7 [shape = 'u8[65536]{0}', space=vmem, size = 0x10000, scoped, tag = 'output window, operand 0, single buffered']
    #allocation8 [shape = 'u8[512]{0}', space=vmem, size = 0x400, scoped, tag = 'output window, operand 1, single buffered']
    #allocation9 [shape = 's32[1]{0}', space=sflag, size = 0x4, scoped, tag = 'scoped memory for basic_block_forward.4']
    #allocation10 [shape = 'u8[512]{0}', space=vmem, size = 0x400, scoped, tag = 'output window, operand 2, single buffered']
    %10 = vsyncpa [#allocation3], 0
    %11 = vsyncpa [#allocation6], 0
    %12 = vsyncpa [#allocation4], 0
    %13 = vsyncpa [#allocation9], 0
    // Predicated region
    $region2: #{basic_block_forward.4} parent=1 // pred_check
      _
    $region3: #{basic_block_forward.4} parent=1 // pred_check_branch
      %15 = sbr.rel (0) target = $region5
    $region4: #{basic_block_forward.4} parent=1 // pred_region
      %s17 = ssub.s32 1024, 1024
      %18 = vsyncadd [#allocation3], %s17
      %s19 = sshll.u32 [#allocation2], 4
      %s20 = int_to_ptr.vmem [resolvable:$true] %s19
      %25 = dma.hbm_to_vmem [thread:$0]  %s0, 1024, %s20, [#allocation3], 64, 64, 4
    $region5: #{basic_block_forward.4} parent=1 // pred_fallthru
      _
    // Predicated region
    $region6: #{basic_block_forward.4} parent=1 // pred_check
      _
    $region7: #{basic_block_forward.4} parent=1 // pred_check_branch
      %27 = sbr.rel (0) target = $region9
    $region8: #{basic_block_forward.4} parent=1 // pred_region
      %s29 = ssub.s32 1024, 1024
      %30 = vsyncadd [#allocation6], %s29
      %s31 = sshll.u32 [#allocation5], 4
      %s32 = int_to_ptr.vmem [resolvable:$true] %s31
      %37 = dma.hbm_to_vmem [thread:$0]  %s1, 1024, %s32, [#allocation6], 64, 64, 4
    $region9: #{basic_block_forward.4} parent=1 // pred_fallthru
      _
    // Predicated region
    $region10: #{basic_block_forward.4} parent=1 // pred_check
      _
    $region11: #{basic_block_forward.4} parent=1 // pred_check_branch
      %39 = sbr.rel (0) target = $region13
    $region12: #{basic_block_forward.4} parent=1 // pred_region
      %40 = dma.done [#allocation3], 1024
    $region13: #{basic_block_forward.4} parent=1 // pred_fallthru
      _
    // Predicated region
    $region14: #{basic_block_forward.4} parent=1 // pred_check
      _
    $region15: #{basic_block_forward.4} parent=1 // pred_check_branch
      %42 = sbr.rel (0) target = $region17
    $region16: #{basic_block_forward.4} parent=1 // pred_region
      %43 = dma.done [#allocation6], 1024
    $region17: #{basic_block_forward.4} parent=1 // pred_fallthru
      _
    %v45 = vld [vmem:[#allocation2] sm:$0xf]
    %v46 = vld [vmem:[#allocation2 + $0x4] sm:$0xf]
    %v47 = vld [vmem:[#allocation2 + $0x8] sm:$0xf]
    %v48 = vld [vmem:[#allocation2 + $0xc] sm:$0xf]
    %v49 = vld [vmem:[#allocation2 + $0x10] sm:$0xf]
    %v50 = vld [vmem:[#allocation2 + $0x14] sm:$0xf]
    %v51 = vld [vmem:[#allocation2 + $0x18] sm:$0xf]
    %v52 = vld [vmem:[#allocation2 + $0x1c] sm:$0xf]
    %v53 = vld [vmem:[#allocation2 + $0x20] sm:$0xf]
    %v54 = vld [vmem:[#allocation2 + $0x24] sm:$0xf]
    %v55 = vld [vmem:[#allocation2 + $0x28] sm:$0xf]
    %v56 = vld [vmem:[#allocation2 + $0x2c] sm:$0xf]
    %v57 = vld [vmem:[#allocation2 + $0x30] sm:$0xf]
    %v58 = vld [vmem:[#allocation2 + $0x34] sm:$0xf]
    %v59 = vld [vmem:[#allocation2 + $0x38] sm:$0xf]
    %v60 = vld [vmem:[#allocation2 + $0x3c] sm:$0xf]
    %v61 = vld [vmem:[#allocation5] sm:$0xf]
    %v62 = vld [vmem:[#allocation5 + $0x4] sm:$0xf]
    %v63 = vld [vmem:[#allocation5 + $0x8] sm:$0xf]
    %v64 = vld [vmem:[#allocation5 + $0xc] sm:$0xf]
    %v65 = vld [vmem:[#allocation5 + $0x10] sm:$0xf]
    %v66 = vld [vmem:[#allocation5 + $0x14] sm:$0xf]
    %v67 = vld [vmem:[#allocation5 + $0x18] sm:$0xf]
    %v68 = vld [vmem:[#allocation5 + $0x1c] sm:$0xf]
    %v69 = vld [vmem:[#allocation5 + $0x20] sm:$0xf]
    %v70 = vld [vmem:[#allocation5 + $0x24] sm:$0xf]
    %v71 = vld [vmem:[#allocation5 + $0x28] sm:$0xf]
    %v72 = vld [vmem:[#allocation5 + $0x2c] sm:$0xf]
    %v73 = vld [vmem:[#allocation5 + $0x30] sm:$0xf]
    %v74 = vld [vmem:[#allocation5 + $0x34] sm:$0xf]
    %v75 = vld [vmem:[#allocation5 + $0x38] sm:$0xf]
    %v76 = vld [vmem:[#allocation5 + $0x3c] sm:$0xf]
    %v93 = vunpack.c.l.b16 %v45
    %v94 = vunpack.c.l.b16 %v46
    %v95 = vunpack.c.l.b16 %v47
    %v96 = vunpack.c.l.b16 %v48
    %v97 = vunpack.c.l.b16 %v49
    %v98 = vunpack.c.l.b16 %v50
    %v99 = vunpack.c.l.b16 %v51
    %v100 = vunpack.c.l.b16 %v52
    %v101 = vunpack.c.l.b16 %v53
    %v102 = vunpack.c.l.b16 %v54
    %v103 = vunpack.c.l.b16 %v55
    %v104 = vunpack.c.l.b16 %v56
    %v105 = vunpack.c.l.b16 %v57
    %v106 = vunpack.c.l.b16 %v58
    %v107 = vunpack.c.l.b16 %v59
    %v108 = vunpack.c.l.b16 %v60
    %v109 = vpack.c.b16 %v94, %v93
    %v110 = vpack.c.b16 %v96, %v95
    %v111 = vpack.c.b16 %v98, %v97
    %v112 = vpack.c.b16 %v100, %v99
    %v113 = vpack.c.b16 %v102, %v101
    %v114 = vpack.c.b16 %v104, %v103
    %v115 = vpack.c.b16 %v106, %v105
    %v116 = vpack.c.b16 %v108, %v107
    %v141 = vunpack.c.l.b16 %v61
    %v142 = vunpack.c.l.b16 %v62
    %v143 = vunpack.c.l.b16 %v63
    %v144 = vunpack.c.l.b16 %v64
    %v145 = vunpack.c.l.b16 %v65
    %v146 = vunpack.c.l.b16 %v66
    %v147 = vunpack.c.l.b16 %v67
    %v148 = vunpack.c.l.b16 %v68
    %v149 = vunpack.c.l.b16 %v69
    %v150 = vunpack.c.l.b16 %v70
    %v151 = vunpack.c.l.b16 %v71
    %v152 = vunpack.c.l.b16 %v72
    %v153 = vunpack.c.l.b16 %v73
    %v154 = vunpack.c.l.b16 %v74
    %v155 = vunpack.c.l.b16 %v75
    %v156 = vunpack.c.l.b16 %v76
    %v157 = vpack.c.b16 %v142, %v141
    %v158 = vpack.c.b16 %v144, %v143
    %v159 = vpack.c.b16 %v146, %v145
    %v160 = vpack.c.b16 %v148, %v147
    %v161 = vpack.c.b16 %v150, %v149
    %v162 = vpack.c.b16 %v152, %v151
    %v163 = vpack.c.b16 %v154, %v153
    %v164 = vpack.c.b16 %v156, %v155
    %173 = vmatprep.subr.bf16.mxu0 0
    %174 = vmatpush1.bf16.msra.mxu0 %v157
    %175 = vmatprep.subr.bf16.mxu0 0
    %176 = vmatpush1.bf16.msra.mxu0 %v158
    %177 = vmatprep.subr.bf16.mxu0 0
    %178 = vmatpush1.bf16.msra.mxu0 %v159
    %179 = vmatprep.subr.bf16.mxu0 0
    %180 = vmatpush1.bf16.msra.mxu0 %v160
    %181 = vmatprep.subr.bf16.mxu0 0
    %182 = vmatpush1.bf16.msra.mxu0 %v161
    %183 = vmatprep.subr.bf16.mxu0 0
    %184 = vmatpush1.bf16.msra.mxu0 %v162
    %185 = vmatprep.subr.bf16.mxu0 0
    %186 = vmatpush1.bf16.msra.mxu0 %v163
    %187 = vmatprep.subr.bf16.mxu0 0
    %188 = vmatpush1.bf16.msra.mxu0 %v164
    %189 = vmatprep.subr.bf16.mxu0 0
    %190 = vmatpush1.bf16.msra.mxu0 0
    %191 = vmatprep.subr.bf16.mxu0 0
    %192 = vmatpush1.bf16.msra.mxu0 0
    %193 = vmatprep.subr.bf16.mxu0 0
    %194 = vmatpush1.bf16.msra.mxu0 0
    %195 = vmatprep.subr.bf16.mxu0 0
    %196 = vmatpush1.bf16.msra.mxu0 0
    %197 = vmatprep.subr.bf16.mxu0 0
    %198 = vmatpush1.bf16.msra.mxu0 0
    %199 = vmatprep.subr.bf16.mxu0 0
    %200 = vmatpush1.bf16.msra.mxu0 0
    %201 = vmatprep.subr.bf16.mxu0 0
    %202 = vmatpush1.bf16.msra.mxu0 0
    %203 = vmatprep.subr.bf16.mxu0 0
    %204 = vmatpush1.bf16.msra.mxu0 0
    %205 = vmatprep.mubr.bf16.mxu0 0
    %206 = vmatmul.mubr.bf16.gmra.mrb[0].mxu0 %v109
    %v207 = vpop.f32.mrb[0].mxu0
    %v208 = vadd.f32 0.0, %v207
    %v209 = vpop.f32.mrb[0].mxu0
    %v210 = vpop.f32.mrb[0].mxu0
    %v211 = vadd.f32 0.0, %v210
    %v212 = vpop.f32.mrb[0].mxu0
    %213 = vmatprep.mubr.bf16.mxu0 0
    %214 = vmatmul.mubr.bf16.gmra.mrb[0].mxu0 %v110
    %v215 = vpop.f32.mrb[0].mxu0
    %v216 = vadd.f32 0.0, %v215
    %v217 = vpop.f32.mrb[0].mxu0
    %v218 = vpop.f32.mrb[0].mxu0
    %v219 = vadd.f32 0.0, %v218
    %v220 = vpop.f32.mrb[0].mxu0
    %221 = vmatprep.mubr.bf16.mxu0 0
    %222 = vmatmul.mubr.bf16.gmra.mrb[0].mxu0 %v111
    %v223 = vpop.f32.mrb[0].mxu0
    %v224 = vadd.f32 0.0, %v223
    %v225 = vpop.f32.mrb[0].mxu0
    %v226 = vpop.f32.mrb[0].mxu0
    %v227 = vadd.f32 0.0, %v226
    %v228 = vpop.f32.mrb[0].mxu0
    %229 = vmatprep.mubr.bf16.mxu0 0
    %230 = vmatmul.mubr.bf16.gmra.mrb[0].mxu0 %v112
    %v231 = vpop.f32.mrb[0].mxu0
    %v232 = vadd.f32 0.0, %v231
    %v233 = vpop.f32.mrb[0].mxu0
    %v234 = vpop.f32.mrb[0].mxu0
    %v235 = vadd.f32 0.0, %v234
    %v236 = vpop.f32.mrb[0].mxu0
    %237 = vmatprep.mubr.bf16.mxu0 0
    %238 = vmatmul.mubr.bf16.gmra.mrb[0].mxu0 %v113
    %v239 = vpop.f32.mrb[0].mxu0
    %v240 = vadd.f32 0.0, %v239
    %v241 = vpop.f32.mrb[0].mxu0
    %v242 = vpop.f32.mrb[0].mxu0
    %v243 = vadd.f32 0.0, %v242
    %v244 = vpop.f32.mrb[0].mxu0
    %245 = vmatprep.mubr.bf16.mxu0 0
    %246 = vmatmul.mubr.bf16.gmra.mrb[0].mxu0 %v114
    %v247 = vpop.f32.mrb[0].mxu0
    %v248 = vadd.f32 0.0, %v247
    %v249 = vpop.f32.mrb[0].mxu0
    %v250 = vpop.f32.mrb[0].mxu0
    %v251 = vadd.f32 0.0, %v250
    %v252 = vpop.f32.mrb[0].mxu0
    %253 = vmatprep.mubr.bf16.mxu0 0
    %254 = vmatmul.mubr.bf16.gmra.mrb[0].mxu0 %v115
    %v255 = vpop.f32.mrb[0].mxu0
    %v256 = vadd.f32 0.0, %v255
    %v257 = vpop.f32.mrb[0].mxu0
    %v258 = vpop.f32.mrb[0].mxu0
    %v259 = vadd.f32 0.0, %v258
    %v260 = vpop.f32.mrb[0].mxu0
    %261 = vmatprep.mubr.bf16.mxu0 0
    %262 = vmatmul.mubr.bf16.gmra.mrb[0].mxu0 %v116
    %v263 = vpop.f32.mrb[0].mxu0
    %v264 = vadd.f32 0.0, %v263
    %v265 = vpop.f32.mrb[0].mxu0
    %v266 = vpop.f32.mrb[0].mxu0
    %v267 = vadd.f32 0.0, %v266
    %v268 = vpop.f32.mrb[0].mxu0
    %269 = vdwg.mxu0
    %270 = vst [vmem:[#allocation7] sm:$0xff] %v208
    %271 = vst [vmem:[#allocation7 + $0x8] sm:$0xff] %v211
    %272 = vst [vmem:[#allocation7 + $0x10] sm:$0xff] %v216
    %273 = vst [vmem:[#allocation7 + $0x18] sm:$0xff] %v219
    %274 = vst [vmem:[#allocation7 + $0x20] sm:$0xff] %v224
    %275 = vst [vmem:[#allocation7 + $0x28] sm:$0xff] %v227
    %276 = vst [vmem:[#allocation7 + $0x30] sm:$0xff] %v232
    %277 = vst [vmem:[#allocation7 + $0x38] sm:$0xff] %v235
    %278 = vst [vmem:[#allocation7 + $0x40] sm:$0xff] %v240
    %279 = vst [vmem:[#allocation7 + $0x48] sm:$0xff] %v243
    %280 = vst [vmem:[#allocation7 + $0x50] sm:$0xff] %v248
    %281 = vst [vmem:[#allocation7 + $0x58] sm:$0xff] %v251
    %282 = vst [vmem:[#allocation7 + $0x60] sm:$0xff] %v256
    %283 = vst [vmem:[#allocation7 + $0x68] sm:$0xff] %v259
    %284 = vst [vmem:[#allocation7 + $0x70] sm:$0xff] %v264
    %285 = vst [vmem:[#allocation7 + $0x78] sm:$0xff] %v267
    %v286 = vadd.f32 %v208, %v211
    %v287 = vadd.f32 %v286, %v216
    %v288 = vadd.f32 %v287, %v219
    %v289 = vadd.f32 %v288, %v224
    %v290 = vadd.f32 %v289, %v227
    %v291 = vadd.f32 %v290, %v232
    %v292 = vadd.f32 %v291, %v235
    %v293 = vadd.f32 %v292, %v240
    %v294 = vadd.f32 %v293, %v243
    %v295 = vadd.f32 %v294, %v248
    %v296 = vadd.f32 %v295, %v251
    %v297 = vadd.f32 %v296, %v256
    %v298 = vadd.f32 %v297, %v259
    %v299 = vadd.f32 %v298, %v264
    %v300 = vadd.f32 %v299, %v267
    %v301 = vrot.slane %v300, 4
    %v302 = vadd.f32 %v300, %v301
    %v303 = vrot.slane %v302, 2
    %v304 = vadd.f32 %v302, %v303
    %v305 = vrot.slane %v304, 1
    %v306 = vadd.f32 %v304, %v305
    %307 = vst [vmem:[#allocation8] sm:$0x1] %v306
    %v308 = vmul.f32 %v208, %v208
    %v309 = vmul.f32 %v211, %v211
    %v310 = vmul.f32 %v216, %v216
    %v311 = vmul.f32 %v219, %v219
    %v312 = vmul.f32 %v224, %v224
    %v313 = vmul.f32 %v227, %v227
    %v314 = vmul.f32 %v232, %v232
    %v315 = vmul.f32 %v235, %v235
    %v316 = vmul.f32 %v240, %v240
    %v317 = vmul.f32 %v243, %v243
    %v318 = vmul.f32 %v248, %v248
    %v319 = vmul.f32 %v251, %v251
    %v320 = vmul.f32 %v256, %v256
    %v321 = vmul.f32 %v259, %v259
    %v322 = vmul.f32 %v264, %v264
    %v323 = vmul.f32 %v267, %v267
    %v324 = vadd.f32 %v308, %v309
    %v325 = vadd.f32 %v324, %v310
    %v326 = vadd.f32 %v325, %v311
    %v327 = vadd.f32 %v326, %v312
    %v328 = vadd.f32 %v327, %v313
    %v329 = vadd.f32 %v328, %v314
    %v330 = vadd.f32 %v329, %v315
    %v331 = vadd.f32 %v330, %v316
    %v332 = vadd.f32 %v331, %v317
    %v333 = vadd.f32 %v332, %v318
    %v334 = vadd.f32 %v333, %v319
    %v335 = vadd.f32 %v334, %v320
    %v336 = vadd.f32 %v335, %v321
    %v337 = vadd.f32 %v336, %v322
    %v338 = vadd.f32 %v337, %v323
    %v339 = vrot.slane %v338, 4
    %v340 = vadd.f32 %v338, %v339
    %v341 = vrot.slane %v340, 2
    %v342 = vadd.f32 %v340, %v341
    %v343 = vrot.slane %v342, 1
    %v344 = vadd.f32 %v342, %v343
    %345 = vst [vmem:[#allocation10] sm:$0x1] %v344
    // Predicated region
    $region18: #{basic_block_forward.4} parent=1 // pred_check
      _
    $region19: #{basic_block_forward.4} parent=1 // pred_check_branch
      %347 = sbr.rel (0) target = $region21
    $region20: #{basic_block_forward.4} parent=1 // pred_region
      %s349 = ssub.s32 2048, 2048
      %350 = vsyncadd [#allocation4], %s349
      %s351 = sshll.u32 [#allocation7], 4
      %s352 = int_to_ptr.vmem [resolvable:$true] %s351
      %357 = dma.vmem_to_hbm [thread:$0]  %s352, 2048, %s2, [#allocation4], 128, 128, 8
    $region21: #{basic_block_forward.4} parent=1 // pred_fallthru
      _
    // Predicated region
    $region22: #{basic_block_forward.4} parent=1 // pred_check
      _
    $region23: #{basic_block_forward.4} parent=1 // pred_check_branch
      %359 = sbr.rel (0) target = $region25
    $region24: #{basic_block_forward.4} parent=1 // pred_region
      %s361 = ssub.s32 16, 16
      %362 = vsyncadd [#allocation9], %s361
      %s364 = sshll.u32 [#allocation8], 4
      %s365 = int_to_ptr.vmem [resolvable:$true] %s364
      %367 = dma.vmem_to_hbm [thread:$0]  %s365, 16, %s3, [#allocation9]
    $region25: #{basic_block_forward.4} parent=1 // pred_fallthru
      _
    // Predicated region
    $region26: #{basic_block_forward.4} parent=1 // pred_check
      _
    $region27: #{basic_block_forward.4} parent=1 // pred_check_branch
      %369 = sbr.rel (0) target = $region29
    $region28: #{basic_block_forward.4} parent=1 // pred_region
      %s371 = ssub.s32 16, 16
      %372 = vsyncadd [#allocation9], %s371
      %s374 = sshll.u32 [#allocation10], 4
      %s375 = int_to_ptr.vmem [resolvable:$true] %s374
      %377 = dma.vmem_to_hbm [thread:$0]  %s375, 16, %s4, [#allocation9]
    $region29: #{basic_block_forward.4} parent=1 // pred_fallthru
      _
    // Predicated region
    $region30: #{basic_block_forward.4} parent=1 // pred_check
      _
    $region31: #{basic_block_forward.4} parent=1 // pred_check_branch
      %379 = sbr.rel (0) target = $region33
    $region32: #{basic_block_forward.4} parent=1 // pred_region
      %380 = dma.done [#allocation4], 2048
    $region33: #{basic_block_forward.4} parent=1 // pred_fallthru
      _
    // Predicated region
    $region34: #{basic_block_forward.4} parent=1 // pred_check
      _
    $region35: #{basic_block_forward.4} parent=1 // pred_check_branch
      %382 = sbr.rel (0) target = $region37
    $region36: #{basic_block_forward.4} parent=1 // pred_region
      %383 = dma.done [#allocation9], 16
    $region37: #{basic_block_forward.4} parent=1 // pred_fallthru
      _
    // Predicated region
    $region38: #{basic_block_forward.4} parent=1 // pred_check
      _
    $region39: #{basic_block_forward.4} parent=1 // pred_check_branch
      %385 = sbr.rel (0) target = $region41
    $region40: #{basic_block_forward.4} parent=1 // pred_region
      %386 = dma.done [#allocation9], 16
    $region41: #{basic_block_forward.4} parent=1 // pred_fallthru
      _
    %387 = vsyncpa [#allocation3], 1
    %388 = vsyncpa [#allocation6], 1
    %389 = vsyncpa [#allocation4], 1
    %390 = vsyncpa [#allocation9], 1

// kernel: basic_block_forward.5
$region0: #{basic_block_forward.5}
  #allocation0 [shape = 'u32[]', space=smem, size = 0x4, offset = 0x4, fixed_abs, tag = 'smem constant byte address 0x4 - core index']
  #allocation1 [shape = 'u32[144,128]{1,0:T(1,128)}', space=vmem, size = 0x12000, scoped, tag = 'internal scratch']
  %s0 = inlined_call_operand.hbm [shape: f32[128,128], index: 0, kind: input, shape index: {}]
  %s1 = inlined_call_operand.hbm [shape: f32[1,128], index: 1, kind: input, shape index: {}]
  %s2 = inlined_call_operand.hbm [shape: f32[1,128], index: 2, kind: input, shape index: {}]
  %s3 = inlined_call_operand.hbm [shape: bf16[128,128], index: 3, kind: output, shape index: {}]
  %s4 = sld [smem:[#allocation0]]
  $region34: #{basic_block_forward.5} parent=0
    _
  %s6 = ssub.s32 1, %s4
  %s7 = scalar_select 0, %s6, %s4
  $region1: #{basic_block_forward.5} parent=0
    #allocation2 [shape = 'u8[65536]{0}', space=vmem, size = 0x10000, scoped, tag = 'input window, operand 0, single buffered']
    #allocation3 [shape = 's32[1]{0}', space=sflag, size = 0x4, scoped, tag = 'scoped memory for basic_block_forward.5']
    #allocation4 [shape = 's32[1]{0}', space=sflag, size = 0x4, scoped, tag = 'scoped memory for basic_block_forward.5']
    #allocation5 [shape = 'u8[512]{0}', space=vmem, size = 0x400, scoped, tag = 'input window, operand 1, single buffered']
    #allocation6 [shape = 's32[1]{0}', space=sflag, size = 0x4, scoped, tag = 'scoped memory for basic_block_forward.5']
    #allocation7 [shape = 'u8[512]{0}', space=vmem, size = 0x400, scoped, tag = 'input window, operand 2, single buffered']
    #allocation8 [shape = 'u8[32768]{0}', space=vmem, size = 0x8000, scoped, tag = 'output window, operand 0, single buffered']
    %8 = vsyncpa [#allocation3], 0
    %9 = vsyncpa [#allocation6], 0
    %10 = vsyncpa [#allocation4], 0
    // Predicated region
    $region2: #{basic_block_forward.5} parent=1 // pred_check
      _
    $region3: #{basic_block_forward.5} parent=1 // pred_check_branch
      %12 = sbr.rel (0) target = $region5
    $region4: #{basic_block_forward.5} parent=1 // pred_region
      %s14 = ssub.s32 2048, 2048
      %15 = vsyncadd [#allocation3], %s14
      %s16 = sshll.u32 [#allocation2], 4
      %s17 = int_to_ptr.vmem [resolvable:$true] %s16
      %22 = dma.hbm_to_vmem [thread:$0]  %s0, 2048, %s17, [#allocation3], 128, 128, 8
    $region5: #{basic_block_forward.5} parent=1 // pred_fallthru
      _
    // Predicated region
    $region6: #{basic_block_forward.5} parent=1 // pred_check
      _
    $region7: #{basic_block_forward.5} parent=1 // pred_check_branch
      %24 = sbr.rel (0) target = $region9
    $region8: #{basic_block_forward.5} parent=1 // pred_region
      %s26 = ssub.s32 16, 16
      %27 = vsyncadd [#allocation6], %s26
      %s29 = sshll.u32 [#allocation5], 4
      %s30 = int_to_ptr.vmem [resolvable:$true] %s29
      %32 = dma.hbm_to_vmem [thread:$0]  %s1, 16, %s30, [#allocation6]
    $region9: #{basic_block_forward.5} parent=1 // pred_fallthru
      _
    // Predicated region
    $region10: #{basic_block_forward.5} parent=1 // pred_check
      _
    $region11: #{basic_block_forward.5} parent=1 // pred_check_branch
      %34 = sbr.rel (0) target = $region13
    $region12: #{basic_block_forward.5} parent=1 // pred_region
      %s36 = ssub.s32 16, 16
      %37 = vsyncadd [#allocation6], %s36
      %s39 = sshll.u32 [#allocation7], 4
      %s40 = int_to_ptr.vmem [resolvable:$true] %s39
      %42 = dma.hbm_to_vmem [thread:$0]  %s2, 16, %s40, [#allocation6]
    $region13: #{basic_block_forward.5} parent=1 // pred_fallthru
      _
    // Predicated region
    $region14: #{basic_block_forward.5} parent=1 // pred_check
      _
    $region15: #{basic_block_forward.5} parent=1 // pred_check_branch
      %44 = sbr.rel (0) target = $region17
    $region16: #{basic_block_forward.5} parent=1 // pred_region
      %45 = dma.done [#allocation3], 2048
    $region17: #{basic_block_forward.5} parent=1 // pred_fallthru
      _
    // Predicated region
    $region18: #{basic_block_forward.5} parent=1 // pred_check
      _
    $region19: #{basic_block_forward.5} parent=1 // pred_check_branch
      %47 = sbr.rel (0) target = $region21
    $region20: #{basic_block_forward.5} parent=1 // pred_region
      %48 = dma.done [#allocation6], 16
    $region21: #{basic_block_forward.5} parent=1 // pred_fallthru
      _
    // Predicated region
    $region22: #{basic_block_forward.5} parent=1 // pred_check
      _
    $region23: #{basic_block_forward.5} parent=1 // pred_check_branch
      %50 = sbr.rel (0) target = $region25
    $region24: #{basic_block_forward.5} parent=1 // pred_region
      %51 = dma.done [#allocation6], 16
    $region25: #{basic_block_forward.5} parent=1 // pred_fallthru
      _
    %v52 = vld [vmem:[#allocation2] sm:$0xff]
    %v53 = vld [vmem:[#allocation2 + $0x8] sm:$0xff]
    %v54 = vld [vmem:[#allocation2 + $0x10] sm:$0xff]
    %v55 = vld [vmem:[#allocation2 + $0x18] sm:$0xff]
    %v56 = vld [vmem:[#allocation2 + $0x20] sm:$0xff]
    %v57 = vld [vmem:[#allocation2 + $0x28] sm:$0xff]
    %v58 = vld [vmem:[#allocation2 + $0x30] sm:$0xff]
    %v59 = vld [vmem:[#allocation2 + $0x38] sm:$0xff]
    %v60 = vld [vmem:[#allocation2 + $0x40] sm:$0xff]
    %v61 = vld [vmem:[#allocation2 + $0x48] sm:$0xff]
    %v62 = vld [vmem:[#allocation2 + $0x50] sm:$0xff]
    %v63 = vld [vmem:[#allocation2 + $0x58] sm:$0xff]
    %v64 = vld [vmem:[#allocation2 + $0x60] sm:$0xff]
    %v65 = vld [vmem:[#allocation2 + $0x68] sm:$0xff]
    %v66 = vld [vmem:[#allocation2 + $0x70] sm:$0xff]
    %v67 = vld [vmem:[#allocation2 + $0x78] sm:$0xff]
    %v68 = vld [vmem:[#allocation5] sm:$0x1]
    %v70 = vlaneseq
    %v71 = vshrl.u32 %v70, 7
    %v72 = vsub.s32 0, %v71
    %v73 = vrot.slane %v68, %v72
    %v75 = vmul.f32 %v52, %v73
    %v76 = vmul.f32 %v53, %v73
    %v77 = vmul.f32 %v54, %v73
    %v78 = vmul.f32 %v55, %v73
    %v79 = vmul.f32 %v56, %v73
    %v80 = vmul.f32 %v57, %v73
    %v81 = vmul.f32 %v58, %v73
    %v82 = vmul.f32 %v59, %v73
    %v83 = vmul.f32 %v60, %v73
    %v84 = vmul.f32 %v61, %v73
    %v85 = vmul.f32 %v62, %v73
    %v86 = vmul.f32 %v63, %v73
    %v87 = vmul.f32 %v64, %v73
    %v88 = vmul.f32 %v65, %v73
    %v89 = vmul.f32 %v66, %v73
    %v90 = vmul.f32 %v67, %v73
    %v91 = vld [vmem:[#allocation7] sm:$0x1]
    %v93 = vlaneseq
    %v94 = vshrl.u32 %v93, 7
    %v95 = vsub.s32 0, %v94
    %v96 = vrot.slane %v91, %v95
    %v98 = vadd.f32 %v75, %v96
    %v99 = vadd.f32 %v76, %v96
    %v100 = vadd.f32 %v77, %v96
    %v101 = vadd.f32 %v78, %v96
    %v102 = vadd.f32 %v79, %v96
    %v103 = vadd.f32 %v80, %v96
    %v104 = vadd.f32 %v81, %v96
    %v105 = vadd.f32 %v82, %v96
    %v106 = vadd.f32 %v83, %v96
    %v107 = vadd.f32 %v84, %v96
    %v108 = vadd.f32 %v85, %v96
    %v109 = vadd.f32 %v86, %v96
    %v110 = vadd.f32 %v87, %v96
    %v111 = vadd.f32 %v88, %v96
    %v112 = vadd.f32 %v89, %v96
    %v113 = vadd.f32 %v90, %v96
    %v114 = vmax.f32 %v98, 0.0
    %v115 = vmax.f32 %v99, 0.0
    %v116 = vmax.f32 %v100, 0.0
    %v117 = vmax.f32 %v101, 0.0
    %v118 = vmax.f32 %v102, 0.0
    %v119 = vmax.f32 %v103, 0.0
    %v120 = vmax.f32 %v104, 0.0
    %v121 = vmax.f32 %v105, 0.0
    %v122 = vmax.f32 %v106, 0.0
    %v123 = vmax.f32 %v107, 0.0
    %v124 = vmax.f32 %v108, 0.0
    %v125 = vmax.f32 %v109, 0.0
    %v126 = vmax.f32 %v110, 0.0
    %v127 = vmax.f32 %v111, 0.0
    %v128 = vmax.f32 %v112, 0.0
    %v129 = vmax.f32 %v113, 0.0
    %v130 = vpack.c.bf16 %v115, %v114
    %v131 = vpack.c.bf16 %v117, %v116
    %v132 = vpack.c.bf16 %v119, %v118
    %v133 = vpack.c.bf16 %v121, %v120
    %v134 = vpack.c.bf16 %v123, %v122
    %v135 = vpack.c.bf16 %v125, %v124
    %v136 = vpack.c.bf16 %v127, %v126
    %v137 = vpack.c.bf16 %v129, %v128
    %v146 = vunpack.c.l.b16 %v130
    %v147 = vunpack.c.h.b16 %v130
    %v148 = vunpack.c.l.b16 %v131
    %v149 = vunpack.c.h.b16 %v131
    %v150 = vunpack.c.l.b16 %v132
    %v151 = vunpack.c.h.b16 %v132
    %v152 = vunpack.c.l.b16 %v133
    %v153 = vunpack.c.h.b16 %v133
    %v154 = vunpack.c.l.b16 %v134
    %v155 = vunpack.c.h.b16 %v134
    %v156 = vunpack.c.l.b16 %v135
    %v157 = vunpack.c.h.b16 %v135
    %v158 = vunpack.c.l.b16 %v136
    %v159 = vunpack.c.h.b16 %v136
    %v160 = vunpack.c.l.b16 %v137
    %v161 = vunpack.c.h.b16 %v137
    %v162 = vpack.c.b16 %v146, %v146
    %v163 = vpack.c.b16 %v147, %v147
    %v164 = vpack.c.b16 %v148, %v148
    %v165 = vpack.c.b16 %v149, %v149
    %v166 = vpack.c.b16 %v150, %v150
    %v167 = vpack.c.b16 %v151, %v151
    %v168 = vpack.c.b16 %v152, %v152
    %v169 = vpack.c.b16 %v153, %v153
    %v170 = vpack.c.b16 %v154, %v154
    %v171 = vpack.c.b16 %v155, %v155
    %v172 = vpack.c.b16 %v156, %v156
    %v173 = vpack.c.b16 %v157, %v157
    %v174 = vpack.c.b16 %v158, %v158
    %v175 = vpack.c.b16 %v159, %v159
    %v176 = vpack.c.b16 %v160, %v160
    %v177 = vpack.c.b16 %v161, %v161
    %194 = vst [vmem:[#allocation8] sm:$0xf] %v162
    %195 = vst [vmem:[#allocation8 + $0x4] sm:$0xf] %v163
    %196 = vst [vmem:[#allocation8 + $0x8] sm:$0xf] %v164
    %197 = vst [vmem:[#allocation8 + $0xc] sm:$0xf] %v165
    %198 = vst [vmem:[#allocation8 + $0x10] sm:$0xf] %v166
    %199 = vst [vmem:[#allocation8 + $0x14] sm:$0xf] %v167
    %200 = vst [vmem:[#allocation8 + $0x18] sm:$0xf] %v168
    %201 = vst [vmem:[#allocation8 + $0x1c] sm:$0xf] %v169
    %202 = vst [vmem:[#allocation8 + $0x20] sm:$0xf] %v170
    %203 = vst [vmem:[#allocation8 + $0x24] sm:$0xf] %v171
    %204 = vst [vmem:[#allocation8 + $0x28] sm:$0xf] %v172
    %205 = vst [vmem:[#allocation8 + $0x2c] sm:$0xf] %v173
    %206 = vst [vmem:[#allocation8 + $0x30] sm:$0xf] %v174
    %207 = vst [vmem:[#allocation8 + $0x34] sm:$0xf] %v175
    %208 = vst [vmem:[#allocation8 + $0x38] sm:$0xf] %v176
    %209 = vst [vmem:[#allocation8 + $0x3c] sm:$0xf] %v177
    // Predicated region
    $region26: #{basic_block_forward.5} parent=1 // pred_check
      _
    $region27: #{basic_block_forward.5} parent=1 // pred_check_branch
      %211 = sbr.rel (0) target = $region29
    $region28: #{basic_block_forward.5} parent=1 // pred_region
      %s213 = ssub.s32 1024, 1024
      %214 = vsyncadd [#allocation4], %s213
      %s215 = sshll.u32 [#allocation8], 4
      %s216 = int_to_ptr.vmem [resolvable:$true] %s215
      %221 = dma.vmem_to_hbm [thread:$0]  %s216, 1024, %s3, [#allocation4], 64, 64, 4
    $region29: #{basic_block_forward.5} parent=1 // pred_fallthru
      _
    // Predicated region
    $region30: #{basic_block_forward.5} parent=1 // pred_check
      _
    $region31: #{basic_block_forward.5} parent=1 // pred_check_branch
      %223 = sbr.rel (0) target = $region33
    $region32: #{basic_block_forward.5} parent=1 // pred_region
      %224 = dma.done [#allocation4], 1024
    $region33: #{basic_block_forward.5} parent=1 // pred_fallthru
      _
    %225 = vsyncpa [#allocation3], 1
    %226 = vsyncpa [#allocation6], 1
    %227 = vsyncpa [#allocation4], 1

// kernel: basic_block_forward.7
$region0: #{basic_block_forward.7}
  #allocation0 [shape = 'u32[]', space=smem, size = 0x4, offset = 0x4, fixed_abs, tag = 'smem constant byte address 0x4 - core index']
  #allocation1 [shape = 'u32[144,128]{1,0:T(1,128)}', space=vmem, size = 0x12000, scoped, tag = 'internal scratch']
  %s0 = inlined_call_operand.hbm [shape: f32[128,128], index: 0, kind: input, shape index: {}]
  %s1 = inlined_call_operand.hbm [shape: f32[1,128], index: 1, kind: input, shape index: {}]
  %s2 = inlined_call_operand.hbm [shape: f32[1,128], index: 2, kind: input, shape index: {}]
  %s3 = inlined_call_operand.hbm [shape: f32[128,128], index: 3, kind: input, shape index: {}]
  %s4 = inlined_call_operand.hbm [shape: f32[1,128], index: 4, kind: input, shape index: {}]
  %s5 = inlined_call_operand.hbm [shape: f32[1,128], index: 5, kind: input, shape index: {}]
  %s6 = inlined_call_operand.hbm [shape: f32[128,128], index: 6, kind: output, shape index: {}]
  %s7 = sld [smem:[#allocation0]]
  $region58: #{basic_block_forward.7} parent=0
    _
  %s9 = ssub.s32 1, %s7
  %s10 = scalar_select 0, %s9, %s7
  $region1: #{basic_block_forward.7} parent=0
    #allocation2 [shape = 'u8[65536]{0}', space=vmem, size = 0x10000, scoped, tag = 'input window, operand 0, single buffered']
    #allocation3 [shape = 's32[1]{0}', space=sflag, size = 0x4, scoped, tag = 'scoped memory for basic_block_forward.7']
    #allocation4 [shape = 's32[1]{0}', space=sflag, size = 0x4, scoped, tag = 'scoped memory for basic_block_forward.7']
    #allocation5 [shape = 'u8[512]{0}', space=vmem, size = 0x400, scoped, tag = 'input window, operand 1, single buffered']
    #allocation6 [shape = 's32[1]{0}', space=sflag, size = 0x4, scoped, tag = 'scoped memory for basic_block_forward.7']
    #allocation7 [shape = 'u8[512]{0}', space=vmem, size = 0x400, scoped, tag = 'input window, operand 2, single buffered']
    #allocation8 [shape = 'u8[65536]{0}', space=vmem, size = 0x10000, scoped, tag = 'input window, operand 3, single buffered']
    #allocation9 [shape = 's32[1]{0}', space=sflag, size = 0x4, scoped, tag = 'scoped memory for basic_block_forward.7']
    #allocation10 [shape = 'u8[512]{0}', space=vmem, size = 0x400, scoped, tag = 'input window, operand 4, single buffered']
    #allocation11 [shape = 'u8[512]{0}', space=vmem, size = 0x400, scoped, tag = 'input window, operand 5, single buffered']
    #allocation12 [shape = 's32[1]{0}', space=sflag, size = 0x4, scoped, tag = 'scoped memory for basic_block_forward.7']
    #allocation13 [shape = 'u8[65536]{0}', space=vmem, size = 0x10000, scoped, tag = 'output window, operand 0, single buffered']
    %11 = vsyncpa [#allocation3], 0
    %12 = vsyncpa [#allocation6], 0
    %13 = vsyncpa [#allocation9], 0
    %14 = vsyncpa [#allocation12], 0
    %15 = vsyncpa [#allocation4], 0
    // Predicated region
    $region2: #{basic_block_forward.7} parent=1 // pred_check
      _
    $region3: #{basic_block_forward.7} parent=1 // pred_check_branch
      %17 = sbr.rel (0) target = $region5
    $region4: #{basic_block_forward.7} parent=1 // pred_region
      %s19 = ssub.s32 2048, 2048
      %20 = vsyncadd [#allocation3], %s19
      %s21 = sshll.u32 [#allocation2], 4
      %s22 = int_to_ptr.vmem [resolvable:$true] %s21
      %27 = dma.hbm_to_vmem [thread:$0]  %s0, 2048, %s22, [#allocation3], 128, 128, 8
    $region5: #{basic_block_forward.7} parent=1 // pred_fallthru
      _
    // Predicated region
    $region6: #{basic_block_forward.7} parent=1 // pred_check
      _
    $region7: #{basic_block_forward.7} parent=1 // pred_check_branch
      %29 = sbr.rel (0) target = $region9
    $region8: #{basic_block_forward.7} parent=1 // pred_region
      %s31 = ssub.s32 16, 16
      %32 = vsyncadd [#allocation6], %s31
      %s34 = sshll.u32 [#allocation5], 4
      %s35 = int_to_ptr.vmem [resolvable:$true] %s34
      %37 = dma.hbm_to_vmem [thread:$0]  %s1, 16, %s35, [#allocation6]
    $region9: #{basic_block_forward.7} parent=1 // pred_fallthru
      _
    // Predicated region
    $region10: #{basic_block_forward.7} parent=1 // pred_check
      _
    $region11: #{basic_block_forward.7} parent=1 // pred_check_branch
      %39 = sbr.rel (0) target = $region13
    $region12: #{basic_block_forward.7} parent=1 // pred_region
      %s41 = ssub.s32 16, 16
      %42 = vsyncadd [#allocation6], %s41
      %s44 = sshll.u32 [#allocation7], 4
      %s45 = int_to_ptr.vmem [resolvable:$true] %s44
      %47 = dma.hbm_to_vmem [thread:$0]  %s2, 16, %s45, [#allocation6]
    $region13: #{basic_block_forward.7} parent=1 // pred_fallthru
      _
    // Predicated region
    $region14: #{basic_block_forward.7} parent=1 // pred_check
      _
    $region15: #{basic_block_forward.7} parent=1 // pred_check_branch
      %49 = sbr.rel (0) target = $region17
    $region16: #{basic_block_forward.7} parent=1 // pred_region
      %s51 = ssub.s32 2048, 2048
      %52 = vsyncadd [#allocation9], %s51
      %s53 = sshll.u32 [#allocation8], 4
      %s54 = int_to_ptr.vmem [resolvable:$true] %s53
      %59 = dma.hbm_to_vmem [thread:$0]  %s3, 2048, %s54, [#allocation9], 128, 128, 8
    $region17: #{basic_block_forward.7} parent=1 // pred_fallthru
      _
    // Predicated region
    $region18: #{basic_block_forward.7} parent=1 // pred_check
      _
    $region19: #{basic_block_forward.7} parent=1 // pred_check_branch
      %61 = sbr.rel (0) target = $region21
    $region20: #{basic_block_forward.7} parent=1 // pred_region
      %s63 = ssub.s32 16, 16
      %64 = vsyncadd [#allocation9], %s63
      %s66 = sshll.u32 [#allocation10], 4
      %s67 = int_to_ptr.vmem [resolvable:$true] %s66
      %69 = dma.hbm_to_vmem [thread:$0]  %s4, 16, %s67, [#allocation9]
    $region21: #{basic_block_forward.7} parent=1 // pred_fallthru
      _
    // Predicated region
    $region22: #{basic_block_forward.7} parent=1 // pred_check
      _
    $region23: #{basic_block_forward.7} parent=1 // pred_check_branch
      %71 = sbr.rel (0) target = $region25
    $region24: #{basic_block_forward.7} parent=1 // pred_region
      %s73 = ssub.s32 16, 16
      %74 = vsyncadd [#allocation12], %s73
      %s76 = sshll.u32 [#allocation11], 4
      %s77 = int_to_ptr.vmem [resolvable:$true] %s76
      %79 = dma.hbm_to_vmem [thread:$0]  %s5, 16, %s77, [#allocation12]
    $region25: #{basic_block_forward.7} parent=1 // pred_fallthru
      _
    // Predicated region
    $region26: #{basic_block_forward.7} parent=1 // pred_check
      _
    $region27: #{basic_block_forward.7} parent=1 // pred_check_branch
      %81 = sbr.rel (0) target = $region29
    $region28: #{basic_block_forward.7} parent=1 // pred_region
      %82 = dma.done [#allocation3], 2048
    $region29: #{basic_block_forward.7} parent=1 // pred_fallthru
      _
    // Predicated region
    $region30: #{basic_block_forward.7} parent=1 // pred_check
      _
    $region31: #{basic_block_forward.7} parent=1 // pred_check_branch
      %84 = sbr.rel (0) target = $region33
    $region32: #{basic_block_forward.7} parent=1 // pred_region
      %85 = dma.done [#allocation6], 16
    $region33: #{basic_block_forward.7} parent=1 // pred_fallthru
      _
    // Predicated region
    $region34: #{basic_block_forward.7} parent=1 // pred_check
      _
    $region35: #{basic_block_forward.7} parent=1 // pred_check_branch
      %87 = sbr.rel (0) target = $region37
    $region36: #{basic_block_forward.7} parent=1 // pred_region
      %88 = dma.done [#allocation6], 16
    $region37: #{basic_block_forward.7} parent=1 // pred_fallthru
      _
    // Predicated region
    $region38: #{basic_block_forward.7} parent=1 // pred_check
      _
    $region39: #{basic_block_forward.7} parent=1 // pred_check_branch
      %90 = sbr.rel (0) target = $region41
    $region40: #{basic_block_forward.7} parent=1 // pred_region
      %91 = dma.done [#allocation9], 2048
    $region41: #{basic_block_forward.7} parent=1 // pred_fallthru
      _
    // Predicated region
    $region42: #{basic_block_forward.7} parent=1 // pred_check
      _
    $region43: #{basic_block_forward.7} parent=1 // pred_check_branch
      %93 = sbr.rel (0) target = $region45
    $region44: #{basic_block_forward.7} parent=1 // pred_region
      %94 = dma.done [#allocation9], 16
    $region45: #{basic_block_forward.7} parent=1 // pred_fallthru
      _
    // Predicated region
    $region46: #{basic_block_forward.7} parent=1 // pred_check
      _
    $region47: #{basic_block_forward.7} parent=1 // pred_check_branch
      %96 = sbr.rel (0) target = $region49
    $region48: #{basic_block_forward.7} parent=1 // pred_region
      %97 = dma.done [#allocation12], 16
    $region49: #{basic_block_forward.7} parent=1 // pred_fallthru
      _
    %v98 = vld [vmem:[#allocation2] sm:$0xff]
    %v99 = vld [vmem:[#allocation2 + $0x8] sm:$0xff]
    %v100 = vld [vmem:[#allocation2 + $0x10] sm:$0xff]
    %v101 = vld [vmem:[#allocation2 + $0x18] sm:$0xff]
    %v102 = vld [vmem:[#allocation2 + $0x20] sm:$0xff]
    %v103 = vld [vmem:[#allocation2 + $0x28] sm:$0xff]
    %v104 = vld [vmem:[#allocation2 + $0x30] sm:$0xff]
    %v105 = vld [vmem:[#allocation2 + $0x38] sm:$0xff]
    %v106 = vld [vmem:[#allocation2 + $0x40] sm:$0xff]
    %v107 = vld [vmem:[#allocation2 + $0x48] sm:$0xff]
    %v108 = vld [vmem:[#allocation2 + $0x50] sm:$0xff]
    %v109 = vld [vmem:[#allocation2 + $0x58] sm:$0xff]
    %v110 = vld [vmem:[#allocation2 + $0x60] sm:$0xff]
    %v111 = vld [vmem:[#allocation2 + $0x68] sm:$0xff]
    %v112 = vld [vmem:[#allocation2 + $0x70] sm:$0xff]
    %v113 = vld [vmem:[#allocation2 + $0x78] sm:$0xff]
    %v114 = vld [vmem:[#allocation5] sm:$0x1]
    %v116 = vlaneseq
    %v117 = vshrl.u32 %v116, 7
    %v118 = vsub.s32 0, %v117
    %v119 = vrot.slane %v114, %v118
    %v121 = vmul.f32 %v98, %v119
    %v122 = vmul.f32 %v99, %v119
    %v123 = vmul.f32 %v100, %v119
    %v124 = vmul.f32 %v101, %v119
    %v125 = vmul.f32 %v102, %v119
    %v126 = vmul.f32 %v103, %v119
    %v127 = vmul.f32 %v104, %v119
    %v128 = vmul.f32 %v105, %v119
    %v129 = vmul.f32 %v106, %v119
    %v130 = vmul.f32 %v107, %v119
    %v131 = vmul.f32 %v108, %v119
    %v132 = vmul.f32 %v109, %v119
    %v133 = vmul.f32 %v110, %v119
    %v134 = vmul.f32 %v111, %v119
    %v135 = vmul.f32 %v112, %v119
    %v136 = vmul.f32 %v113, %v119
    %v137 = vld [vmem:[#allocation7] sm:$0x1]
    %v139 = vlaneseq
    %v140 = vshrl.u32 %v139, 7
    %v141 = vsub.s32 0, %v140
    %v142 = vrot.slane %v137, %v141
    %v144 = vadd.f32 %v121, %v142
    %v145 = vadd.f32 %v122, %v142
    %v146 = vadd.f32 %v123, %v142
    %v147 = vadd.f32 %v124, %v142
    %v148 = vadd.f32 %v125, %v142
    %v149 = vadd.f32 %v126, %v142
    %v150 = vadd.f32 %v127, %v142
    %v151 = vadd.f32 %v128, %v142
    %v152 = vadd.f32 %v129, %v142
    %v153 = vadd.f32 %v130, %v142
    %v154 = vadd.f32 %v131, %v142
    %v155 = vadd.f32 %v132, %v142
    %v156 = vadd.f32 %v133, %v142
    %v157 = vadd.f32 %v134, %v142
    %v158 = vadd.f32 %v135, %v142
    %v159 = vadd.f32 %v136, %v142
    %v160 = vld [vmem:[#allocation8] sm:$0xff]
    %v161 = vld [vmem:[#allocation8 + $0x8] sm:$0xff]
    %v162 = vld [vmem:[#allocation8 + $0x10] sm:$0xff]
    %v163 = vld [vmem:[#allocation8 + $0x18] sm:$0xff]
    %v164 = vld [vmem:[#allocation8 + $0x20] sm:$0xff]
    %v165 = vld [vmem:[#allocation8 + $0x28] sm:$0xff]
    %v166 = vld [vmem:[#allocation8 + $0x30] sm:$0xff]
    %v167 = vld [vmem:[#allocation8 + $0x38] sm:$0xff]
    %v168 = vld [vmem:[#allocation8 + $0x40] sm:$0xff]
    %v169 = vld [vmem:[#allocation8 + $0x48] sm:$0xff]
    %v170 = vld [vmem:[#allocation8 + $0x50] sm:$0xff]
    %v171 = vld [vmem:[#allocation8 + $0x58] sm:$0xff]
    %v172 = vld [vmem:[#allocation8 + $0x60] sm:$0xff]
    %v173 = vld [vmem:[#allocation8 + $0x68] sm:$0xff]
    %v174 = vld [vmem:[#allocation8 + $0x70] sm:$0xff]
    %v175 = vld [vmem:[#allocation8 + $0x78] sm:$0xff]
    %v176 = vld [vmem:[#allocation10] sm:$0x1]
    %v178 = vlaneseq
    %v179 = vshrl.u32 %v178, 7
    %v180 = vsub.s32 0, %v179
    %v181 = vrot.slane %v176, %v180
    %v183 = vmul.f32 %v160, %v181
    %v184 = vmul.f32 %v161, %v181
    %v185 = vmul.f32 %v162, %v181
    %v186 = vmul.f32 %v163, %v181
    %v187 = vmul.f32 %v164, %v181
    %v188 = vmul.f32 %v165, %v181
    %v189 = vmul.f32 %v166, %v181
    %v190 = vmul.f32 %v167, %v181
    %v191 = vmul.f32 %v168, %v181
    %v192 = vmul.f32 %v169, %v181
    %v193 = vmul.f32 %v170, %v181
    %v194 = vmul.f32 %v171, %v181
    %v195 = vmul.f32 %v172, %v181
    %v196 = vmul.f32 %v173, %v181
    %v197 = vmul.f32 %v174, %v181
    %v198 = vmul.f32 %v175, %v181
    %v199 = vld [vmem:[#allocation11] sm:$0x1]
    %v201 = vlaneseq
    %v202 = vshrl.u32 %v201, 7
    %v203 = vsub.s32 0, %v202
    %v204 = vrot.slane %v199, %v203
    %v206 = vadd.f32 %v183, %v204
    %v207 = vadd.f32 %v184, %v204
    %v208 = vadd.f32 %v185, %v204
    %v209 = vadd.f32 %v186, %v204
    %v210 = vadd.f32 %v187, %v204
    %v211 = vadd.f32 %v188, %v204
    %v212 = vadd.f32 %v189, %v204
    %v213 = vadd.f32 %v190, %v204
    %v214 = vadd.f32 %v191, %v204
    %v215 = vadd.f32 %v192, %v204
    %v216 = vadd.f32 %v193, %v204
    %v217 = vadd.f32 %v194, %v204
    %v218 = vadd.f32 %v195, %v204
    %v219 = vadd.f32 %v196, %v204
    %v220 = vadd.f32 %v197, %v204
    %v221 = vadd.f32 %v198, %v204
    %v222 = vadd.f32 %v144, %v206
    %v223 = vadd.f32 %v145, %v207
    %v224 = vadd.f32 %v146, %v208
    %v225 = vadd.f32 %v147, %v209
    %v226 = vadd.f32 %v148, %v210
    %v227 = vadd.f32 %v149, %v211
    %v228 = vadd.f32 %v150, %v212
    %v229 = vadd.f32 %v151, %v213
    %v230 = vadd.f32 %v152, %v214
    %v231 = vadd.f32 %v153, %v215
    %v232 = vadd.f32 %v154, %v216
    %v233 = vadd.f32 %v155, %v217
    %v234 = vadd.f32 %v156, %v218
    %v235 = vadd.f32 %v157, %v219
    %v236 = vadd.f32 %v158, %v220
    %v237 = vadd.f32 %v159, %v221
    %v238 = vmax.f32 %v222, 0.0
    %v239 = vmax.f32 %v223, 0.0
    %v240 = vmax.f32 %v224, 0.0
    %v241 = vmax.f32 %v225, 0.0
    %v242 = vmax.f32 %v226, 0.0
    %v243 = vmax.f32 %v227, 0.0
    %v244 = vmax.f32 %v228, 0.0
    %v245 = vmax.f32 %v229, 0.0
    %v246 = vmax.f32 %v230, 0.0
    %v247 = vmax.f32 %v231, 0.0
    %v248 = vmax.f32 %v232, 0.0
    %v249 = vmax.f32 %v233, 0.0
    %v250 = vmax.f32 %v234, 0.0
    %v251 = vmax.f32 %v235, 0.0
    %v252 = vmax.f32 %v236, 0.0
    %v253 = vmax.f32 %v237, 0.0
    %254 = vst [vmem:[#allocation13] sm:$0xff] %v238
    %255 = vst [vmem:[#allocation13 + $0x8] sm:$0xff] %v239
    %256 = vst [vmem:[#allocation13 + $0x10] sm:$0xff] %v240
    %257 = vst [vmem:[#allocation13 + $0x18] sm:$0xff] %v241
    %258 = vst [vmem:[#allocation13 + $0x20] sm:$0xff] %v242
    %259 = vst [vmem:[#allocation13 + $0x28] sm:$0xff] %v243
    %260 = vst [vmem:[#allocation13 + $0x30] sm:$0xff] %v244
    %261 = vst [vmem:[#allocation13 + $0x38] sm:$0xff] %v245
    %262 = vst [vmem:[#allocation13 + $0x40] sm:$0xff] %v246
    %263 = vst [vmem:[#allocation13 + $0x48] sm:$0xff] %v247
    %264 = vst [vmem:[#allocation13 + $0x50] sm:$0xff] %v248
    %265 = vst [vmem:[#allocation13 + $0x58] sm:$0xff] %v249
    %266 = vst [vmem:[#allocation13 + $0x60] sm:$0xff] %v250
    %267 = vst [vmem:[#allocation13 + $0x68] sm:$0xff] %v251
    %268 = vst [vmem:[#allocation13 + $0x70] sm:$0xff] %v252
    %269 = vst [vmem:[#allocation13 + $0x78] sm:$0xff] %v253
    // Predicated region
    $region50: #{basic_block_forward.7} parent=1 // pred_check
      _
    $region51: #{basic_block_forward.7} parent=1 // pred_check_branch
      %271 = sbr.rel (0) target = $region53
    $region52: #{basic_block_forward.7} parent=1 // pred_region
      %s273 = ssub.s32 2048, 2048
      %274 = vsyncadd [#allocation4], %s273
      %s275 = sshll.u32 [#allocation13], 4
      %s276 = int_to_ptr.vmem [resolvable:$true] %s275
      %281 = dma.vmem_to_hbm [thread:$0]  %s276, 2048, %s6, [#allocation4], 128, 128, 8
    $region53: #{basic_block_forward.7} parent=1 // pred_fallthru
      _
    // Predicated region
    $region54: #{basic_block_forward.7} parent=1 // pred_check
      _
    $region55: #{basic_block_forward.7} parent=1 // pred_check_branch
      %283 = sbr.rel (0) target = $region57
    $region56: #{basic_block_forward.7} parent=1 // pred_region
      %284 = dma.done [#allocation4], 2048
    $region57: #{basic_block_forward.7} parent=1 // pred_fallthru
      _
    %285 = vsyncpa [#allocation3], 1
    %286 = vsyncpa [#allocation6], 1
    %287 = vsyncpa [#allocation9], 1
    %288 = vsyncpa [#allocation12], 1
    %289 = vsyncpa [#allocation4], 1

// kernel: basic_block_forward.6
$region0: #{basic_block_forward.6}
  #allocation0 [shape = 'u32[]', space=smem, size = 0x4, offset = 0x4, fixed_abs, tag = 'smem constant byte address 0x4 - core index']
  #allocation1 [shape = 'u32[144,128]{1,0:T(1,128)}', space=vmem, size = 0x12000, scoped, tag = 'internal scratch']
  %s0 = inlined_call_operand.hbm [shape: bf16[128,128], index: 0, kind: input, shape index: {}]
  %s1 = inlined_call_operand.hbm [shape: bf16[128,128], index: 1, kind: input, shape index: {}]
  %s2 = inlined_call_operand.hbm [shape: bf16[128,128], index: 2, kind: input, shape index: {}]
  %s3 = inlined_call_operand.hbm [shape: bf16[128,128], index: 3, kind: input, shape index: {}]
  %s4 = inlined_call_operand.hbm [shape: f32[128,128], index: 4, kind: output, shape index: {0}]
  %s5 = inlined_call_operand.hbm [shape: f32[128,128], index: 5, kind: output, shape index: {1}]
  %s6 = inlined_call_operand.hbm [shape: f32[1,1,128], index: 6, kind: output, shape index: {2}]
  %s7 = inlined_call_operand.hbm [shape: f32[1,1,128], index: 7, kind: output, shape index: {3}]
  %s8 = inlined_call_operand.hbm [shape: f32[1,1,128], index: 8, kind: output, shape index: {4}]
  %s9 = inlined_call_operand.hbm [shape: f32[1,1,128], index: 9, kind: output, shape index: {5}]
  %10 = xla_tuple %s4, %s5, %s6, %s7, %s8, %s9
  %s11 = sld [smem:[#allocation0]]
  $region82: #{basic_block_forward.6} parent=0
    _
  %s13 = ssub.s32 1, %s11
  %s14 = scalar_select 0, %s13, %s11
  $region1: #{basic_block_forward.6} parent=0
    #allocation2 [shape = 'u8[32768]{0}', space=vmem, size = 0x8000, scoped, tag = 'input window, operand 0, single buffered']
    #allocation3 [shape = 's32[1]{0}', space=sflag, size = 0x4, scoped, tag = 'scoped memory for basic_block_forward.6']
    #allocation4 [shape = 's32[1]{0}', space=sflag, size = 0x4, scoped, tag = 'scoped memory for basic_block_forward.6']
    #allocation5 [shape = 'u8[32768]{0}', space=vmem, size = 0x8000, scoped, tag = 'input window, operand 1, single buffered']
    #allocation6 [shape = 's32[1]{0}', space=sflag, size = 0x4, scoped, tag = 'scoped memory for basic_block_forward.6']
    #allocation7 [shape = 'u8[32768]{0}', space=vmem, size = 0x8000, scoped, tag = 'input window, operand 2, single buffered']
    #allocation8 [shape = 'u8[32768]{0}', space=vmem, size = 0x8000, scoped, tag = 'input window, operand 3, single buffered']
    #allocation9 [shape = 's32[1]{0}', space=sflag, size = 0x4, scoped, tag = 'scoped memory for basic_block_forward.6']
    #allocation10 [shape = 'u8[65536]{0}', space=vmem, size = 0x10000, scoped, tag = 'output window, operand 0, single buffered']
    #allocation11 [shape = 'u8[65536]{0}', space=vmem, size = 0x10000, scoped, tag = 'output window, operand 1, single buffered']
    #allocation12 [shape = 's32[1]{0}', space=sflag, size = 0x4, scoped, tag = 'scoped memory for basic_block_forward.6']
    #allocation13 [shape = 'u8[512]{0}', space=vmem, size = 0x400, scoped, tag = 'output window, operand 2, single buffered']
    #allocation14 [shape = 'u8[512]{0}', space=vmem, size = 0x400, scoped, tag = 'output window, operand 3, single buffered']
    #allocation15 [shape = 's32[1]{0}', space=sflag, size = 0x4, scoped, tag = 'scoped memory for basic_block_forward.6']
    #allocation16 [shape = 'u8[512]{0}', space=vmem, size = 0x400, scoped, tag = 'output window, operand 4, single buffered']
    #allocation17 [shape = 'u8[512]{0}', space=vmem, size = 0x400, scoped, tag = 'output window, operand 5, single buffered']
    #allocation18 [shape = 's32[1]{0}', space=sflag, size = 0x4, scoped, tag = 'scoped memory for basic_block_forward.6']
    %15 = vsyncpa [#allocation3], 0
    %16 = vsyncpa [#allocation6], 0
    %17 = vsyncpa [#allocation9], 0
    %18 = vsyncpa [#allocation4], 0
    %19 = vsyncpa [#allocation12], 0
    %20 = vsyncpa [#allocation15], 0
    %21 = vsyncpa [#allocation18], 0
    // Predicated region
    $region2: #{basic_block_forward.6} parent=1 // pred_check
      _
    $region3: #{basic_block_forward.6} parent=1 // pred_check_branch
      %23 = sbr.rel (0) target = $region5
    $region4: #{basic_block_forward.6} parent=1 // pred_region
      %s25 = ssub.s32 1024, 1024
      %26 = vsyncadd [#allocation3], %s25
      %s27 = sshll.u32 [#allocation2], 4
      %s28 = int_to_ptr.vmem [resolvable:$true] %s27
      %33 = dma.hbm_to_vmem [thread:$0]  %s0, 1024, %s28, [#allocation3], 64, 64, 4
    $region5: #{basic_block_forward.6} parent=1 // pred_fallthru
      _
    // Predicated region
    $region6: #{basic_block_forward.6} parent=1 // pred_check
      _
    $region7: #{basic_block_forward.6} parent=1 // pred_check_branch
      %35 = sbr.rel (0) target = $region9
    $region8: #{basic_block_forward.6} parent=1 // pred_region
      %s37 = ssub.s32 1024, 1024
      %38 = vsyncadd [#allocation6], %s37
      %s39 = sshll.u32 [#allocation5], 4
      %s40 = int_to_ptr.vmem [resolvable:$true] %s39
      %45 = dma.hbm_to_vmem [thread:$0]  %s1, 1024, %s40, [#allocation6], 64, 64, 4
    $region9: #{basic_block_forward.6} parent=1 // pred_fallthru
      _
    // Predicated region
    $region10: #{basic_block_forward.6} parent=1 // pred_check
      _
    $region11: #{basic_block_forward.6} parent=1 // pred_check_branch
      %47 = sbr.rel (0) target = $region13
    $region12: #{basic_block_forward.6} parent=1 // pred_region
      %s49 = ssub.s32 1024, 1024
      %50 = vsyncadd [#allocation6], %s49
      %s51 = sshll.u32 [#allocation7], 4
      %s52 = int_to_ptr.vmem [resolvable:$true] %s51
      %57 = dma.hbm_to_vmem [thread:$0]  %s2, 1024, %s52, [#allocation6], 64, 64, 4
    $region13: #{basic_block_forward.6} parent=1 // pred_fallthru
      _
    // Predicated region
    $region14: #{basic_block_forward.6} parent=1 // pred_check
      _
    $region15: #{basic_block_forward.6} parent=1 // pred_check_branch
      %59 = sbr.rel (0) target = $region17
    $region16: #{basic_block_forward.6} parent=1 // pred_region
      %s61 = ssub.s32 1024, 1024
      %62 = vsyncadd [#allocation9], %s61
      %s63 = sshll.u32 [#allocation8], 4
      %s64 = int_to_ptr.vmem [resolvable:$true] %s63
      %69 = dma.hbm_to_vmem [thread:$0]  %s3, 1024, %s64, [#allocation9], 64, 64, 4
    $region17: #{basic_block_forward.6} parent=1 // pred_fallthru
      _
    // Predicated region
    $region18: #{basic_block_forward.6} parent=1 // pred_check
      _
    $region19: #{basic_block_forward.6} parent=1 // pred_check_branch
      %71 = sbr.rel (0) target = $region21
    $region20: #{basic_block_forward.6} parent=1 // pred_region
      %72 = dma.done [#allocation3], 1024
    $region21: #{basic_block_forward.6} parent=1 // pred_fallthru
      _
    // Predicated region
    $region22: #{basic_block_forward.6} parent=1 // pred_check
      _
    $region23: #{basic_block_forward.6} parent=1 // pred_check_branch
      %74 = sbr.rel (0) target = $region25
    $region24: #{basic_block_forward.6} parent=1 // pred_region
      %75 = dma.done [#allocation6], 1024
    $region25: #{basic_block_forward.6} parent=1 // pred_fallthru
      _
    // Predicated region
    $region26: #{basic_block_forward.6} parent=1 // pred_check
      _
    $region27: #{basic_block_forward.6} parent=1 // pred_check_branch
      %77 = sbr.rel (0) target = $region29
    $region28: #{basic_block_forward.6} parent=1 // pred_region
      %78 = dma.done [#allocation6], 1024
    $region29: #{basic_block_forward.6} parent=1 // pred_fallthru
      _
    // Predicated region
    $region30: #{basic_block_forward.6} parent=1 // pred_check
      _
    $region31: #{basic_block_forward.6} parent=1 // pred_check_branch
      %80 = sbr.rel (0) target = $region33
    $region32: #{basic_block_forward.6} parent=1 // pred_region
      %81 = dma.done [#allocation9], 1024
    $region33: #{basic_block_forward.6} parent=1 // pred_fallthru
      _
    %v83 = vld [vmem:[#allocation2] sm:$0xf]
    %v84 = vld [vmem:[#allocation2 + $0x4] sm:$0xf]
    %v85 = vld [vmem:[#allocation2 + $0x8] sm:$0xf]
    %v86 = vld [vmem:[#allocation2 + $0xc] sm:$0xf]
    %v87 = vld [vmem:[#allocation2 + $0x10] sm:$0xf]
    %v88 = vld [vmem:[#allocation2 + $0x14] sm:$0xf]
    %v89 = vld [vmem:[#allocation2 + $0x18] sm:$0xf]
    %v90 = vld [vmem:[#allocation2 + $0x1c] sm:$0xf]
    %v91 = vld [vmem:[#allocation2 + $0x20] sm:$0xf]
    %v92 = vld [vmem:[#allocation2 + $0x24] sm:$0xf]
    %v93 = vld [vmem:[#allocation2 + $0x28] sm:$0xf]
    %v94 = vld [vmem:[#allocation2 + $0x2c] sm:$0xf]
    %v95 = vld [vmem:[#allocation2 + $0x30] sm:$0xf]
    %v96 = vld [vmem:[#allocation2 + $0x34] sm:$0xf]
    %v97 = vld [vmem:[#allocation2 + $0x38] sm:$0xf]
    %v98 = vld [vmem:[#allocation2 + $0x3c] sm:$0xf]
    %v99 = vld [vmem:[#allocation5] sm:$0xf]
    %v100 = vld [vmem:[#allocation5 + $0x4] sm:$0xf]
    %v101 = vld [vmem:[#allocation5 + $0x8] sm:$0xf]
    %v102 = vld [vmem:[#allocation5 + $0xc] sm:$0xf]
    %v103 = vld [vmem:[#allocation5 + $0x10] sm:$0xf]
    %v104 = vld [vmem:[#allocation5 + $0x14] sm:$0xf]
    %v105 = vld [vmem:[#allocation5 + $0x18] sm:$0xf]
    %v106 = vld [vmem:[#allocation5 + $0x1c] sm:$0xf]
    %v107 = vld [vmem:[#allocation5 + $0x20] sm:$0xf]
    %v108 = vld [vmem:[#allocation5 + $0x24] sm:$0xf]
    %v109 = vld [vmem:[#allocation5 + $0x28] sm:$0xf]
    %v110 = vld [vmem:[#allocation5 + $0x2c] sm:$0xf]
    %v111 = vld [vmem:[#allocation5 + $0x30] sm:$0xf]
    %v112 = vld [vmem:[#allocation5 + $0x34] sm:$0xf]
    %v113 = vld [vmem:[#allocation5 + $0x38] sm:$0xf]
    %v114 = vld [vmem:[#allocation5 + $0x3c] sm:$0xf]
    %v131 = vunpack.c.l.b16 %v83
    %v132 = vunpack.c.l.b16 %v84
    %v133 = vunpack.c.l.b16 %v85
    %v134 = vunpack.c.l.b16 %v86
    %v135 = vunpack.c.l.b16 %v87
    %v136 = vunpack.c.l.b16 %v88
    %v137 = vunpack.c.l.b16 %v89
    %v138 = vunpack.c.l.b16 %v90
    %v139 = vunpack.c.l.b16 %v91
    %v140 = vunpack.c.l.b16 %v92
    %v141 = vunpack.c.l.b16 %v93
    %v142 = vunpack.c.l.b16 %v94
    %v143 = vunpack.c.l.b16 %v95
    %v144 = vunpack.c.l.b16 %v96
    %v145 = vunpack.c.l.b16 %v97
    %v146 = vunpack.c.l.b16 %v98
    %v147 = vpack.c.b16 %v132, %v131
    %v148 = vpack.c.b16 %v134, %v133
    %v149 = vpack.c.b16 %v136, %v135
    %v150 = vpack.c.b16 %v138, %v137
    %v151 = vpack.c.b16 %v140, %v139
    %v152 = vpack.c.b16 %v142, %v141
    %v153 = vpack.c.b16 %v144, %v143
    %v154 = vpack.c.b16 %v146, %v145
    %v179 = vunpack.c.l.b16 %v99
    %v180 = vunpack.c.l.b16 %v100
    %v181 = vunpack.c.l.b16 %v101
    %v182 = vunpack.c.l.b16 %v102
    %v183 = vunpack.c.l.b16 %v103
    %v184 = vunpack.c.l.b16 %v104
    %v185 = vunpack.c.l.b16 %v105
    %v186 = vunpack.c.l.b16 %v106
    %v187 = vunpack.c.l.b16 %v107
    %v188 = vunpack.c.l.b16 %v108
    %v189 = vunpack.c.l.b16 %v109
    %v190 = vunpack.c.l.b16 %v110
    %v191 = vunpack.c.l.b16 %v111
    %v192 = vunpack.c.l.b16 %v112
    %v193 = vunpack.c.l.b16 %v113
    %v194 = vunpack.c.l.b16 %v114
    %v195 = vpack.c.b16 %v180, %v179
    %v196 = vpack.c.b16 %v182, %v181
    %v197 = vpack.c.b16 %v184, %v183
    %v198 = vpack.c.b16 %v186, %v185
    %v199 = vpack.c.b16 %v188, %v187
    %v200 = vpack.c.b16 %v190, %v189
    %v201 = vpack.c.b16 %v192, %v191
    %v202 = vpack.c.b16 %v194, %v193
    %211 = vmatprep.subr.bf16.mxu0 0
    %212 = vmatpush1.bf16.msra.mxu0 %v195
    %213 = vmatprep.subr.bf16.mxu0 0
    %214 = vmatpush1.bf16.msra.mxu0 %v196
    %215 = vmatprep.subr.bf16.mxu0 0
    %216 = vmatpush1.bf16.msra.mxu0 %v197
    %217 = vmatprep.subr.bf16.mxu0 0
    %218 = vmatpush1.bf16.msra.mxu0 %v198
    %219 = vmatprep.subr.bf16.mxu0 0
    %220 = vmatpush1.bf16.msra.mxu0 %v199
    %221 = vmatprep.subr.bf16.mxu0 0
    %222 = vmatpush1.bf16.msra.mxu0 %v200
    %223 = vmatprep.subr.bf16.mxu0 0
    %224 = vmatpush1.bf16.msra.mxu0 %v201
    %225 = vmatprep.subr.bf16.mxu0 0
    %226 = vmatpush1.bf16.msra.mxu0 %v202
    %227 = vmatprep.subr.bf16.mxu0 0
    %228 = vmatpush1.bf16.msra.mxu0 0
    %229 = vmatprep.subr.bf16.mxu0 0
    %230 = vmatpush1.bf16.msra.mxu0 0
    %231 = vmatprep.subr.bf16.mxu0 0
    %232 = vmatpush1.bf16.msra.mxu0 0
    %233 = vmatprep.subr.bf16.mxu0 0
    %234 = vmatpush1.bf16.msra.mxu0 0
    %235 = vmatprep.subr.bf16.mxu0 0
    %236 = vmatpush1.bf16.msra.mxu0 0
    %237 = vmatprep.subr.bf16.mxu0 0
    %238 = vmatpush1.bf16.msra.mxu0 0
    %239 = vmatprep.subr.bf16.mxu0 0
    %240 = vmatpush1.bf16.msra.mxu0 0
    %241 = vmatprep.subr.bf16.mxu0 0
    %242 = vmatpush1.bf16.msra.mxu0 0
    %243 = vmatprep.mubr.bf16.mxu0 0
    %244 = vmatmul.mubr.bf16.gmra.mrb[0].mxu0 %v147
    %v245 = vpop.f32.mrb[0].mxu0
    %v246 = vadd.f32 0.0, %v245
    %v247 = vpop.f32.mrb[0].mxu0
    %v248 = vpop.f32.mrb[0].mxu0
    %v249 = vadd.f32 0.0, %v248
    %v250 = vpop.f32.mrb[0].mxu0
    %251 = vmatprep.mubr.bf16.mxu0 0
    %252 = vmatmul.mubr.bf16.gmra.mrb[0].mxu0 %v148
    %v253 = vpop.f32.mrb[0].mxu0
    %v254 = vadd.f32 0.0, %v253
    %v255 = vpop.f32.mrb[0].mxu0
    %v256 = vpop.f32.mrb[0].mxu0
    %v257 = vadd.f32 0.0, %v256
    %v258 = vpop.f32.mrb[0].mxu0
    %259 = vmatprep.mubr.bf16.mxu0 0
    %260 = vmatmul.mubr.bf16.gmra.mrb[0].mxu0 %v149
    %v261 = vpop.f32.mrb[0].mxu0
    %v262 = vadd.f32 0.0, %v261
    %v263 = vpop.f32.mrb[0].mxu0
    %v264 = vpop.f32.mrb[0].mxu0
    %v265 = vadd.f32 0.0, %v264
    %v266 = vpop.f32.mrb[0].mxu0
    %267 = vmatprep.mubr.bf16.mxu0 0
    %268 = vmatmul.mubr.bf16.gmra.mrb[0].mxu0 %v150
    %v269 = vpop.f32.mrb[0].mxu0
    %v270 = vadd.f32 0.0, %v269
    %v271 = vpop.f32.mrb[0].mxu0
    %v272 = vpop.f32.mrb[0].mxu0
    %v273 = vadd.f32 0.0, %v272
    %v274 = vpop.f32.mrb[0].mxu0
    %275 = vmatprep.mubr.bf16.mxu0 0
    %276 = vmatmul.mubr.bf16.gmra.mrb[0].mxu0 %v151
    %v277 = vpop.f32.mrb[0].mxu0
    %v278 = vadd.f32 0.0, %v277
    %v279 = vpop.f32.mrb[0].mxu0
    %v280 = vpop.f32.mrb[0].mxu0
    %v281 = vadd.f32 0.0, %v280
    %v282 = vpop.f32.mrb[0].mxu0
    %283 = vmatprep.mubr.bf16.mxu0 0
    %284 = vmatmul.mubr.bf16.gmra.mrb[0].mxu0 %v152
    %v285 = vpop.f32.mrb[0].mxu0
    %v286 = vadd.f32 0.0, %v285
    %v287 = vpop.f32.mrb[0].mxu0
    %v288 = vpop.f32.mrb[0].mxu0
    %v289 = vadd.f32 0.0, %v288
    %v290 = vpop.f32.mrb[0].mxu0
    %291 = vmatprep.mubr.bf16.mxu0 0
    %292 = vmatmul.mubr.bf16.gmra.mrb[0].mxu0 %v153
    %v293 = vpop.f32.mrb[0].mxu0
    %v294 = vadd.f32 0.0, %v293
    %v295 = vpop.f32.mrb[0].mxu0
    %v296 = vpop.f32.mrb[0].mxu0
    %v297 = vadd.f32 0.0, %v296
    %v298 = vpop.f32.mrb[0].mxu0
    %299 = vmatprep.mubr.bf16.mxu0 0
    %300 = vmatmul.mubr.bf16.gmra.mrb[0].mxu0 %v154
    %v301 = vpop.f32.mrb[0].mxu0
    %v302 = vadd.f32 0.0, %v301
    %v303 = vpop.f32.mrb[0].mxu0
    %v304 = vpop.f32.mrb[0].mxu0
    %v305 = vadd.f32 0.0, %v304
    %v306 = vpop.f32.mrb[0].mxu0
    %307 = vdwg.mxu0
    %v308 = vld [vmem:[#allocation7] sm:$0xf]
    %v309 = vld [vmem:[#allocation7 + $0x4] sm:$0xf]
    %v310 = vld [vmem:[#allocation7 + $0x8] sm:$0xf]
    %v311 = vld [vmem:[#allocation7 + $0xc] sm:$0xf]
    %v312 = vld [vmem:[#allocation7 + $0x10] sm:$0xf]
    %v313 = vld [vmem:[#allocation7 + $0x14] sm:$0xf]
    %v314 = vld [vmem:[#allocation7 + $0x18] sm:$0xf]
    %v315 = vld [vmem:[#allocation7 + $0x1c] sm:$0xf]
    %v316 = vld [vmem:[#allocation7 + $0x20] sm:$0xf]
    %v317 = vld [vmem:[#allocation7 + $0x24] sm:$0xf]
    %v318 = vld [vmem:[#allocation7 + $0x28] sm:$0xf]
    %v319 = vld [vmem:[#allocation7 + $0x2c] sm:$0xf]
    %v320 = vld [vmem:[#allocation7 + $0x30] sm:$0xf]
    %v321 = vld [vmem:[#allocation7 + $0x34] sm:$0xf]
    %v322 = vld [vmem:[#allocation7 + $0x38] sm:$0xf]
    %v323 = vld [vmem:[#allocation7 + $0x3c] sm:$0xf]
    %v324 = vld [vmem:[#allocation8] sm:$0xf]
    %v325 = vld [vmem:[#allocation8 + $0x4] sm:$0xf]
    %v326 = vld [vmem:[#allocation8 + $0x8] sm:$0xf]
    %v327 = vld [vmem:[#allocation8 + $0xc] sm:$0xf]
    %v328 = vld [vmem:[#allocation8 + $0x10] sm:$0xf]
    %v329 = vld [vmem:[#allocation8 + $0x14] sm:$0xf]
    %v330 = vld [vmem:[#allocation8 + $0x18] sm:$0xf]
    %v331 = vld [vmem:[#allocation8 + $0x1c] sm:$0xf]
    %v332 = vld [vmem:[#allocation8 + $0x20] sm:$0xf]
    %v333 = vld [vmem:[#allocation8 + $0x24] sm:$0xf]
    %v334 = vld [vmem:[#allocation8 + $0x28] sm:$0xf]
    %v335 = vld [vmem:[#allocation8 + $0x2c] sm:$0xf]
    %v336 = vld [vmem:[#allocation8 + $0x30] sm:$0xf]
    %v337 = vld [vmem:[#allocation8 + $0x34] sm:$0xf]
    %v338 = vld [vmem:[#allocation8 + $0x38] sm:$0xf]
    %v339 = vld [vmem:[#allocation8 + $0x3c] sm:$0xf]
    %v356 = vunpack.c.l.b16 %v308
    %v357 = vunpack.c.l.b16 %v309
    %v358 = vunpack.c.l.b16 %v310
    %v359 = vunpack.c.l.b16 %v311
    %v360 = vunpack.c.l.b16 %v312
    %v361 = vunpack.c.l.b16 %v313
    %v362 = vunpack.c.l.b16 %v314
    %v363 = vunpack.c.l.b16 %v315
    %v364 = vunpack.c.l.b16 %v316
    %v365 = vunpack.c.l.b16 %v317
    %v366 = vunpack.c.l.b16 %v318
    %v367 = vunpack.c.l.b16 %v319
    %v368 = vunpack.c.l.b16 %v320
    %v369 = vunpack.c.l.b16 %v321
    %v370 = vunpack.c.l.b16 %v322
    %v371 = vunpack.c.l.b16 %v323
    %v372 = vpack.c.b16 %v357, %v356
    %v373 = vpack.c.b16 %v359, %v358
    %v374 = vpack.c.b16 %v361, %v360
    %v375 = vpack.c.b16 %v363, %v362
    %v376 = vpack.c.b16 %v365, %v364
    %v377 = vpack.c.b16 %v367, %v366
    %v378 = vpack.c.b16 %v369, %v368
    %v379 = vpack.c.b16 %v371, %v370
    %v404 = vunpack.c.l.b16 %v324
    %v405 = vunpack.c.l.b16 %v325
    %v406 = vunpack.c.l.b16 %v326
    %v407 = vunpack.c.l.b16 %v327
    %v408 = vunpack.c.l.b16 %v328
    %v409 = vunpack.c.l.b16 %v329
    %v410 = vunpack.c.l.b16 %v330
    %v411 = vunpack.c.l.b16 %v331
    %v412 = vunpack.c.l.b16 %v332
    %v413 = vunpack.c.l.b16 %v333
    %v414 = vunpack.c.l.b16 %v334
    %v415 = vunpack.c.l.b16 %v335
    %v416 = vunpack.c.l.b16 %v336
    %v417 = vunpack.c.l.b16 %v337
    %v418 = vunpack.c.l.b16 %v338
    %v419 = vunpack.c.l.b16 %v339
    %v420 = vpack.c.b16 %v405, %v404
    %v421 = vpack.c.b16 %v407, %v406
    %v422 = vpack.c.b16 %v409, %v408
    %v423 = vpack.c.b16 %v411, %v410
    %v424 = vpack.c.b16 %v413, %v412
    %v425 = vpack.c.b16 %v415, %v414
    %v426 = vpack.c.b16 %v417, %v416
    %v427 = vpack.c.b16 %v419, %v418
    %436 = vmatprep.subr.bf16.mxu0 0
    %437 = vmatpush1.bf16.msra.mxu0 %v420
    %438 = vmatprep.subr.bf16.mxu0 0
    %439 = vmatpush1.bf16.msra.mxu0 %v421
    %440 = vmatprep.subr.bf16.mxu0 0
    %441 = vmatpush1.bf16.msra.mxu0 %v422
    %442 = vmatprep.subr.bf16.mxu0 0
    %443 = vmatpush1.bf16.msra.mxu0 %v423
    %444 = vmatprep.subr.bf16.mxu0 0
    %445 = vmatpush1.bf16.msra.mxu0 %v424
    %446 = vmatprep.subr.bf16.mxu0 0
    %447 = vmatpush1.bf16.msra.mxu0 %v425
    %448 = vmatprep.subr.bf16.mxu0 0
    %449 = vmatpush1.bf16.msra.mxu0 %v426
    %450 = vmatprep.subr.bf16.mxu0 0
    %451 = vmatpush1.bf16.msra.mxu0 %v427
    %452 = vmatprep.subr.bf16.mxu0 0
    %453 = vmatpush1.bf16.msra.mxu0 0
    %454 = vmatprep.subr.bf16.mxu0 0
    %455 = vmatpush1.bf16.msra.mxu0 0
    %456 = vmatprep.subr.bf16.mxu0 0
    %457 = vmatpush1.bf16.msra.mxu0 0
    %458 = vmatprep.subr.bf16.mxu0 0
    %459 = vmatpush1.bf16.msra.mxu0 0
    %460 = vmatprep.subr.bf16.mxu0 0
    %461 = vmatpush1.bf16.msra.mxu0 0
    %462 = vmatprep.subr.bf16.mxu0 0
    %463 = vmatpush1.bf16.msra.mxu0 0
    %464 = vmatprep.subr.bf16.mxu0 0
    %465 = vmatpush1.bf16.msra.mxu0 0
    %466 = vmatprep.subr.bf16.mxu0 0
    %467 = vmatpush1.bf16.msra.mxu0 0
    %468 = vmatprep.mubr.bf16.mxu0 0
    %469 = vmatmul.mubr.bf16.gmra.mrb[0].mxu0 %v372
    %v470 = vpop.f32.mrb[0].mxu0
    %v471 = vadd.f32 0.0, %v470
    %v472 = vpop.f32.mrb[0].mxu0
    %v473 = vpop.f32.mrb[0].mxu0
    %v474 = vadd.f32 0.0, %v473
    %v475 = vpop.f32.mrb[0].mxu0
    %476 = vmatprep.mubr.bf16.mxu0 0
    %477 = vmatmul.mubr.bf16.gmra.mrb[0].mxu0 %v373
    %v478 = vpop.f32.mrb[0].mxu0
    %v479 = vadd.f32 0.0, %v478
    %v480 = vpop.f32.mrb[0].mxu0
    %v481 = vpop.f32.mrb[0].mxu0
    %v482 = vadd.f32 0.0, %v481
    %v483 = vpop.f32.mrb[0].mxu0
    %484 = vmatprep.mubr.bf16.mxu0 0
    %485 = vmatmul.mubr.bf16.gmra.mrb[0].mxu0 %v374
    %v486 = vpop.f32.mrb[0].mxu0
    %v487 = vadd.f32 0.0, %v486
    %v488 = vpop.f32.mrb[0].mxu0
    %v489 = vpop.f32.mrb[0].mxu0
    %v490 = vadd.f32 0.0, %v489
    %v491 = vpop.f32.mrb[0].mxu0
    %492 = vmatprep.mubr.bf16.mxu0 0
    %493 = vmatmul.mubr.bf16.gmra.mrb[0].mxu0 %v375
    %v494 = vpop.f32.mrb[0].mxu0
    %v495 = vadd.f32 0.0, %v494
    %v496 = vpop.f32.mrb[0].mxu0
    %v497 = vpop.f32.mrb[0].mxu0
    %v498 = vadd.f32 0.0, %v497
    %v499 = vpop.f32.mrb[0].mxu0
    %500 = vmatprep.mubr.bf16.mxu0 0
    %501 = vmatmul.mubr.bf16.gmra.mrb[0].mxu0 %v376
    %v502 = vpop.f32.mrb[0].mxu0
    %v503 = vadd.f32 0.0, %v502
    %v504 = vpop.f32.mrb[0].mxu0
    %v505 = vpop.f32.mrb[0].mxu0
    %v506 = vadd.f32 0.0, %v505
    %v507 = vpop.f32.mrb[0].mxu0
    %508 = vmatprep.mubr.bf16.mxu0 0
    %509 = vmatmul.mubr.bf16.gmra.mrb[0].mxu0 %v377
    %v510 = vpop.f32.mrb[0].mxu0
    %v511 = vadd.f32 0.0, %v510
    %v512 = vpop.f32.mrb[0].mxu0
    %v513 = vpop.f32.mrb[0].mxu0
    %v514 = vadd.f32 0.0, %v513
    %v515 = vpop.f32.mrb[0].mxu0
    %516 = vmatprep.mubr.bf16.mxu0 0
    %517 = vmatmul.mubr.bf16.gmra.mrb[0].mxu0 %v378
    %v518 = vpop.f32.mrb[0].mxu0
    %v519 = vadd.f32 0.0, %v518
    %v520 = vpop.f32.mrb[0].mxu0
    %v521 = vpop.f32.mrb[0].mxu0
    %v522 = vadd.f32 0.0, %v521
    %v523 = vpop.f32.mrb[0].mxu0
    %524 = vmatprep.mubr.bf16.mxu0 0
    %525 = vmatmul.mubr.bf16.gmra.mrb[0].mxu0 %v379
    %v526 = vpop.f32.mrb[0].mxu0
    %v527 = vadd.f32 0.0, %v526
    %v528 = vpop.f32.mrb[0].mxu0
    %v529 = vpop.f32.mrb[0].mxu0
    %v530 = vadd.f32 0.0, %v529
    %v531 = vpop.f32.mrb[0].mxu0
    %532 = vdwg.mxu0
    %533 = vst [vmem:[#allocation10] sm:$0xff] %v246
    %534 = vst [vmem:[#allocation10 + $0x8] sm:$0xff] %v249
    %535 = vst [vmem:[#allocation10 + $0x10] sm:$0xff] %v254
    %536 = vst [vmem:[#allocation10 + $0x18] sm:$0xff] %v257
    %537 = vst [vmem:[#allocation10 + $0x20] sm:$0xff] %v262
    %538 = vst [vmem:[#allocation10 + $0x28] sm:$0xff] %v265
    %539 = vst [vmem:[#allocation10 + $0x30] sm:$0xff] %v270
    %540 = vst [vmem:[#allocation10 + $0x38] sm:$0xff] %v273
    %541 = vst [vmem:[#allocation10 + $0x40] sm:$0xff] %v278
    %542 = vst [vmem:[#allocation10 + $0x48] sm:$0xff] %v281
    %543 = vst [vmem:[#allocation10 + $0x50] sm:$0xff] %v286
    %544 = vst [vmem:[#allocation10 + $0x58] sm:$0xff] %v289
    %545 = vst [vmem:[#allocation10 + $0x60] sm:$0xff] %v294
    %546 = vst [vmem:[#allocation10 + $0x68] sm:$0xff] %v297
    %547 = vst [vmem:[#allocation10 + $0x70] sm:$0xff] %v302
    %548 = vst [vmem:[#allocation10 + $0x78] sm:$0xff] %v305
    %549 = vst [vmem:[#allocation11] sm:$0xff] %v471
    %550 = vst [vmem:[#allocation11 + $0x8] sm:$0xff] %v474
    %551 = vst [vmem:[#allocation11 + $0x10] sm:$0xff] %v479
    %552 = vst [vmem:[#allocation11 + $0x18] sm:$0xff] %v482
    %553 = vst [vmem:[#allocation11 + $0x20] sm:$0xff] %v487
    %554 = vst [vmem:[#allocation11 + $0x28] sm:$0xff] %v490
    %555 = vst [vmem:[#allocation11 + $0x30] sm:$0xff] %v495
    %556 = vst [vmem:[#allocation11 + $0x38] sm:$0xff] %v498
    %557 = vst [vmem:[#allocation11 + $0x40] sm:$0xff] %v503
    %558 = vst [vmem:[#allocation11 + $0x48] sm:$0xff] %v506
    %559 = vst [vmem:[#allocation11 + $0x50] sm:$0xff] %v511
    %560 = vst [vmem:[#allocation11 + $0x58] sm:$0xff] %v514
    %561 = vst [vmem:[#allocation11 + $0x60] sm:$0xff] %v519
    %562 = vst [vmem:[#allocation11 + $0x68] sm:$0xff] %v522
    %563 = vst [vmem:[#allocation11 + $0x70] sm:$0xff] %v527
    %564 = vst [vmem:[#allocation11 + $0x78] sm:$0xff] %v530
    %v565 = vadd.f32 %v246, %v249
    %v566 = vadd.f32 %v565, %v254
    %v567 = vadd.f32 %v566, %v257
    %v568 = vadd.f32 %v567, %v262
    %v569 = vadd.f32 %v568, %v265
    %v570 = vadd.f32 %v569, %v270
    %v571 = vadd.f32 %v570, %v273
    %v572 = vadd.f32 %v571, %v278
    %v573 = vadd.f32 %v572, %v281
    %v574 = vadd.f32 %v573, %v286
    %v575 = vadd.f32 %v574, %v289
    %v576 = vadd.f32 %v575, %v294
    %v577 = vadd.f32 %v576, %v297
    %v578 = vadd.f32 %v577, %v302
    %v579 = vadd.f32 %v578, %v305
    %v580 = vrot.slane %v579, 4
    %v581 = vadd.f32 %v579, %v580
    %v582 = vrot.slane %v581, 2
    %v583 = vadd.f32 %v581, %v582
    %v584 = vrot.slane %v583, 1
    %v585 = vadd.f32 %v583, %v584
    %586 = vst [vmem:[#allocation13] sm:$0x1] %v585
    %v587 = vmul.f32 %v246, %v246
    %v588 = vmul.f32 %v249, %v249
    %v589 = vmul.f32 %v254, %v254
    %v590 = vmul.f32 %v257, %v257
    %v591 = vmul.f32 %v262, %v262
    %v592 = vmul.f32 %v265, %v265
    %v593 = vmul.f32 %v270, %v270
    %v594 = vmul.f32 %v273, %v273
    %v595 = vmul.f32 %v278, %v278
    %v596 = vmul.f32 %v281, %v281
    %v597 = vmul.f32 %v286, %v286
    %v598 = vmul.f32 %v289, %v289
    %v599 = vmul.f32 %v294, %v294
    %v600 = vmul.f32 %v297, %v297
    %v601 = vmul.f32 %v302, %v302
    %v602 = vmul.f32 %v305, %v305
    %v603 = vadd.f32 %v587, %v588
    %v604 = vadd.f32 %v603, %v589
    %v605 = vadd.f32 %v604, %v590
    %v606 = vadd.f32 %v605, %v591
    %v607 = vadd.f32 %v606, %v592
    %v608 = vadd.f32 %v607, %v593
    %v609 = vadd.f32 %v608, %v594
    %v610 = vadd.f32 %v609, %v595
    %v611 = vadd.f32 %v610, %v596
    %v612 = vadd.f32 %v611, %v597
    %v613 = vadd.f32 %v612, %v598
    %v614 = vadd.f32 %v613, %v599
    %v615 = vadd.f32 %v614, %v600
    %v616 = vadd.f32 %v615, %v601
    %v617 = vadd.f32 %v616, %v602
    %v618 = vrot.slane %v617, 4
    %v619 = vadd.f32 %v617, %v618
    %v620 = vrot.slane %v619, 2
    %v621 = vadd.f32 %v619, %v620
    %v622 = vrot.slane %v621, 1
    %v623 = vadd.f32 %v621, %v622
    %624 = vst [vmem:[#allocation14] sm:$0x1] %v623
    %v625 = vadd.f32 %v471, %v474
    %v626 = vadd.f32 %v625, %v479
    %v627 = vadd.f32 %v626, %v482
    %v628 = vadd.f32 %v627, %v487
    %v629 = vadd.f32 %v628, %v490
    %v630 = vadd.f32 %v629, %v495
    %v631 = vadd.f32 %v630, %v498
    %v632 = vadd.f32 %v631, %v503
    %v633 = vadd.f32 %v632, %v506
    %v634 = vadd.f32 %v633, %v511
    %v635 = vadd.f32 %v634, %v514
    %v636 = vadd.f32 %v635, %v519
    %v637 = vadd.f32 %v636, %v522
    %v638 = vadd.f32 %v637, %v527
    %v639 = vadd.f32 %v638, %v530
    %v640 = vrot.slane %v639, 4
    %v641 = vadd.f32 %v639, %v640
    %v642 = vrot.slane %v641, 2
    %v643 = vadd.f32 %v641, %v642
    %v644 = vrot.slane %v643, 1
    %v645 = vadd.f32 %v643, %v644
    %646 = vst [vmem:[#allocation16] sm:$0x1] %v645
    %v647 = vmul.f32 %v471, %v471
    %v648 = vmul.f32 %v474, %v474
    %v649 = vmul.f32 %v479, %v479
    %v650 = vmul.f32 %v482, %v482
    %v651 = vmul.f32 %v487, %v487
    %v652 = vmul.f32 %v490, %v490
    %v653 = vmul.f32 %v495, %v495
    %v654 = vmul.f32 %v498, %v498
    %v655 = vmul.f32 %v503, %v503
    %v656 = vmul.f32 %v506, %v506
    %v657 = vmul.f32 %v511, %v511
    %v658 = vmul.f32 %v514, %v514
    %v659 = vmul.f32 %v519, %v519
    %v660 = vmul.f32 %v522, %v522
    %v661 = vmul.f32 %v527, %v527
    %v662 = vmul.f32 %v530, %v530
    %v663 = vadd.f32 %v647, %v648
    %v664 = vadd.f32 %v663, %v649
    %v665 = vadd.f32 %v664, %v650
    %v666 = vadd.f32 %v665, %v651
    %v667 = vadd.f32 %v666, %v652
    %v668 = vadd.f32 %v667, %v653
    %v669 = vadd.f32 %v668, %v654
    %v670 = vadd.f32 %v669, %v655
    %v671 = vadd.f32 %v670, %v656
    %v672 = vadd.f32 %v671, %v657
    %v673 = vadd.f32 %v672, %v658
    %v674 = vadd.f32 %v673, %v659
    %v675 = vadd.f32 %v674, %v660
    %v676 = vadd.f32 %v675, %v661
    %v677 = vadd.f32 %v676, %v662
    %v678 = vrot.slane %v677, 4
    %v679 = vadd.f32 %v677, %v678
    %v680 = vrot.slane %v679, 2
    %v681 = vadd.f32 %v679, %v680
    %v682 = vrot.slane %v681, 1
    %v683 = vadd.f32 %v681, %v682
    %684 = vst [vmem:[#allocation17] sm:$0x1] %v683
    // Predicated region
    $region34: #{basic_block_forward.6} parent=1 // pred_check
      _
    $region35: #{basic_block_forward.6} parent=1 // pred_check_branch
      %686 = sbr.rel (0) target = $region37
    $region36: #{basic_block_forward.6} parent=1 // pred_region
      %s688 = ssub.s32 2048, 2048
      %689 = vsyncadd [#allocation4], %s688
      %s690 = sshll.u32 [#allocation10], 4
      %s691 = int_to_ptr.vmem [resolvable:$true] %s690
      %696 = dma.vmem_to_hbm [thread:$0]  %s691, 2048, %s4, [#allocation4], 128, 128, 8
    $region37: #{basic_block_forward.6} parent=1 // pred_fallthru
      _
    // Predicated region
    $region38: #{basic_block_forward.6} parent=1 // pred_check
      _
    $region39: #{basic_block_forward.6} parent=1 // pred_check_branch
      %698 = sbr.rel (0) target = $region41
    $region40: #{basic_block_forward.6} parent=1 // pred_region
      %s700 = ssub.s32 2048, 2048
      %701 = vsyncadd [#allocation12], %s700
      %s702 = sshll.u32 [#allocation11], 4
      %s703 = int_to_ptr.vmem [resolvable:$true] %s702
      %708 = dma.vmem_to_hbm [thread:$0]  %s703, 2048, %s5, [#allocation12], 128, 128, 8
    $region41: #{basic_block_forward.6} parent=1 // pred_fallthru
      _
    // Predicated region
    $region42: #{basic_block_forward.6} parent=1 // pred_check
      _
    $region43: #{basic_block_forward.6} parent=1 // pred_check_branch
      %710 = sbr.rel (0) target = $region45
    $region44: #{basic_block_forward.6} parent=1 // pred_region
      %s712 = ssub.s32 16, 16
      %713 = vsyncadd [#allocation12], %s712
      %s715 = sshll.u32 [#allocation13], 4
      %s716 = int_to_ptr.vmem [resolvable:$true] %s715
      %718 = dma.vmem_to_hbm [thread:$0]  %s716, 16, %s6, [#allocation12]
    $region45: #{basic_block_forward.6} parent=1 // pred_fallthru
      _
    // Predicated region
    $region46: #{basic_block_forward.6} parent=1 // pred_check
      _
    $region47: #{basic_block_forward.6} parent=1 // pred_check_branch
      %720 = sbr.rel (0) target = $region49
    $region48: #{basic_block_forward.6} parent=1 // pred_region
      %s722 = ssub.s32 16, 16
      %723 = vsyncadd [#allocation15], %s722
      %s725 = sshll.u32 [#allocation14], 4
      %s726 = int_to_ptr.vmem [resolvable:$true] %s725
      %728 = dma.vmem_to_hbm [thread:$0]  %s726, 16, %s7, [#allocation15]
    $region49: #{basic_block_forward.6} parent=1 // pred_fallthru
      _
    // Predicated region
    $region50: #{basic_block_forward.6} parent=1 // pred_check
      _
    $region51: #{basic_block_forward.6} parent=1 // pred_check_branch
      %730 = sbr.rel (0) target = $region53
    $region52: #{basic_block_forward.6} parent=1 // pred_region
      %s732 = ssub.s32 16, 16
      %733 = vsyncadd [#allocation15], %s732
      %s735 = sshll.u32 [#allocation16], 4
      %s736 = int_to_ptr.vmem [resolvable:$true] %s735
      %738 = dma.vmem_to_hbm [thread:$0]  %s736, 16, %s8, [#allocation15]
    $region53: #{basic_block_forward.6} parent=1 // pred_fallthru
      _
    // Predicated region
    $region54: #{basic_block_forward.6} parent=1 // pred_check
      _
    $region55: #{basic_block_forward.6} parent=1 // pred_check_branch
      %740 = sbr.rel (0) target = $region57
    $region56: #{basic_block_forward.6} parent=1 // pred_region
      %s742 = ssub.s32 16, 16
      %743 = vsyncadd [#allocation18], %s742
      %s745 = sshll.u32 [#allocation17], 4
      %s746 = int_to_ptr.vmem [resolvable:$true] %s745
      %748 = dma.vmem_to_hbm [thread:$0]  %s746, 16, %s9, [#allocation18]
    $region57: #{basic_block_forward.6} parent=1 // pred_fallthru
      _
    // Predicated region
    $region58: #{basic_block_forward.6} parent=1 // pred_check
      _
    $region59: #{basic_block_forward.6} parent=1 // pred_check_branch
      %750 = sbr.rel (0) target = $region61
    $region60: #{basic_block_forward.6} parent=1 // pred_region
      %751 = dma.done [#allocation4], 2048
    $region61: #{basic_block_forward.6} parent=1 // pred_fallthru
      _
    // Predicated region
    $region62: #{basic_block_forward.6} parent=1 // pred_check
      _
    $region63: #{basic_block_forward.6} parent=1 // pred_check_branch
      %753 = sbr.rel (0) target = $region65
    $region64: #{basic_block_forward.6} parent=1 // pred_region
      %754 = dma.done [#allocation12], 2048
    $region65: #{basic_block_forward.6} parent=1 // pred_fallthru
      _
    // Predicated region
    $region66: #{basic_block_forward.6} parent=1 // pred_check
      _
    $region67: #{basic_block_forward.6} parent=1 // pred_check_branch
      %756 = sbr.rel (0) target = $region69
    $region68: #{basic_block_forward.6} parent=1 // pred_region
      %757 = dma.done [#allocation12], 16
    $region69: #{basic_block_forward.6} parent=1 // pred_fallthru
      _
    // Predicated region
    $region70: #{basic_block_forward.6} parent=1 // pred_check
      _
    $region71: #{basic_block_forward.6} parent=1 // pred_check_branch
      %759 = sbr.rel (0) target = $region73
    $region72: #{basic_block_forward.6} parent=1 // pred_region
      %760 = dma.done [#allocation15], 16
    $region73: #{basic_block_forward.6} parent=1 // pred_fallthru
      _
    // Predicated region
    $region74: #{basic_block_forward.6} parent=1 // pred_check
      _
    $region75: #{basic_block_forward.6} parent=1 // pred_check_branch
      %762 = sbr.rel (0) target = $region77
    $region76: #{basic_block_forward.6} parent=1 // pred_region
      %763 = dma.done [#allocation15], 16
    $region77: #{basic_block_forward.6} parent=1 // pred_fallthru
      _
    // Predicated region
    $region78: #{basic_block_forward.6} parent=1 // pred_check
      _
    $region79: #{basic_block_forward.6} parent=1 // pred_check_branch
      %765 = sbr.rel (0) target = $region81
    $region80: #{basic_block_forward.6} parent=1 // pred_region
      %766 = dma.done [#allocation18], 16
    $region81: #{basic_block_forward.6} parent=1 // pred_fallthru
      _
    %767 = vsyncpa [#allocation3], 1
    %768 = vsyncpa [#allocation6], 1
    %769 = vsyncpa [#allocation9], 1
    %770 = vsyncpa [#allocation4], 1
    %771 = vsyncpa [#allocation12], 1
    %772 = vsyncpa [#allocation15], 1
    %773 = vsyncpa [#allocation18], 1

</llo_original>
